<compile_context>
chip_gen: v6e
topology: v6e:2x2x1
jax: 0.10.0
libtpu: 0.0.40
codegen_flags: <defaults>
</compile_context>

<pallas_src>
import functools

import jax
import jax.numpy as jnp
from jax import lax
from jax.experimental import pallas as pl
from jax.experimental.pallas import tpu as pltpu


def _gated_conv_kernel(x_ref, w_ref, b_ref, o_ref, col_ref, *,
                       kh, kw, sh, sw, dh, dw, oh, ow, c, ocr):
    """One batch element per grid step.

    x_ref  : (Hp, Wp, C)   f32  spatially padded NHWC image
    w_ref  : (2*OCr, K)    bf16 [W_h ; W_g], K = KH*KW*C, k = (i*kw + j)*C + c
    b_ref  : (2*OCr, 1)    f32  [b_h ; b_g]
    o_ref  : (OCr, M)      f32  gated output, M = OH*OW on the lane axis
    col_ref: (OH, OW, K)   f32  im2col staging scratch
    """
    m = oh * ow
    k = kh * kw * c

    # Stage the KH*KW shifted windows with pure slice copies (no per-position
    # reshape, no accumulator RMW).  Short static unroll (KH*KW iterations).
    for i in range(kh):
        for j in range(kw):
            rs = pl.ds(i * dh, oh) if sh == 1 else pl.ds(i * dh, oh, sh)
            cs = pl.ds(j * dw, ow) if sw == 1 else pl.ds(j * dw, ow, sw)
            col_ref[:, :, pl.ds((i * kw + j) * c, c)] = x_ref[rs, cs, :]
    # TODO(synk): the strided (sh/sw > 1) pl.ds path is not exercised by this
    # module config (stride=(1,1)); validate its codegen before relying on it.

    # One relayout per step ((OH, OW, K) -> (M, K)) feeding a single matmul:
    #   acc[o, m] = sum_k W[o, k] * col[m, k]          -> (2*OCr, M)
    # bf16 MXU operands, f32 accumulation; acc is only 2*OCr*M*4 bytes.
    col = col_ref[...].reshape(m, k).astype(jnp.bfloat16)
    acc = lax.dot_general(w_ref[...], col,
                          dimension_numbers=(((1,), (1,)), ((), ())),
                          preferred_element_type=jnp.float32)
    acc = acc + b_ref[...]                      # bias, one f32 broadcast add

    h = acc[:ocr, :]                            # sublane-aligned row split
    g = acc[ocr:, :]
    # TODO(synk): other torch `activation` choices would be applied to `h`
    # here; this module instantiation uses activation=None.
    o_ref[...] = h * jax.nn.sigmoid(g)          # f32 EUP/VPU, lane-dense store


@functools.partial(jax.jit,
                   static_argnames=("kernel_size", "stride", "padding", "dilation"))
def gated_conv2d(x, wh, bh, wg, bg, *, kernel_size, stride, padding,
                 dilation=(1, 1)):
    """x: (N, C, H, W) f32; wh/wg: (OC, C, KH, KW); bh/bg: (OC,). Returns NCHW f32."""
    n, c, hh, ww = x.shape
    oc = wh.shape[0]
    kh, kw = kernel_size
    sh, sw = stride
    ph, pw = padding
    dh, dw = dilation
    oh = (hh + 2 * ph - dh * (kh - 1) - 1) // sh + 1
    ow = (ww + 2 * pw - dw * (kw - 1) - 1) // sw + 1
    m = oh * ow
    k = kh * kw * c
    ocr = ((oc + 7) // 8) * 8                    # sublane-aligned rows per conv
    hp, wp = hh + 2 * ph, ww + 2 * pw

    # NCHW -> NHWC + spatial zero pad: a single fused XLA pre-pass.  x stays
    # f32 (bf16 is confined to the MXU operands, per the v5e guidance).
    # TODO(synk): this pre-pass could be removed entirely by passing x with
    # memory_space=pl.ANY and DMA-ing it into a zero-initialised VMEM halo.
    xp = jnp.pad(x.transpose(0, 2, 3, 1), ((0, 0), (ph, ph), (pw, pw), (0, 0)))

    # [W_h ; W_g] as one (2*OCr, K) bf16 operand; K ordered (ki, kj, c) to match
    # the kernel's im2col staging.  h rows [0, OCr), g rows [OCr, 2*OCr).
    def _rows(w):
        w2 = w.transpose(0, 2, 3, 1).reshape(oc, k)
        return jnp.pad(w2, ((0, ocr - oc), (0, 0)))
    wcat = jnp.concatenate([_rows(wh), _rows(wg)], axis=0).astype(jnp.bfloat16)
    bcat = jnp.concatenate([jnp.pad(bh, (0, ocr - oc)),
                            jnp.pad(bg, (0, ocr - oc))]
                           ).reshape(2 * ocr, 1).astype(jnp.float32)

    kern = functools.partial(_gated_conv_kernel, kh=kh, kw=kw, sh=sh, sw=sw,
                             dh=dh, dw=dw, oh=oh, ow=ow, c=c, ocr=ocr)

    # Per-generation VMEM budget with headroom (64 MiB on v7x, 128 MiB v5e/v6e).
    def _rup(v, a):
        return ((v + a - 1) // a) * a
    vmem_est = (2 * hp * _rup(wp, 8) * _rup(c, 128) * 4      # x block (dbl buf)
                + 2 * _rup(2 * ocr, 16) * _rup(k, 128) * 2   # resident weights
                + 2 * _rup(2 * ocr, 8) * 128 * 4             # bias
                + 2 * _rup(ocr, 8) * _rup(m, 128) * 4        # out block (dbl buf)
                + oh * _rup(ow, 8) * _rup(k, 128) * 4)       # im2col scratch
    try:
        vmem_cap = int(pltpu.get_tpu_info().vmem_capacity_bytes)
    except Exception:                 # conservative fallback: v7x per-core VMEM
        vmem_cap = 64 * 1024 * 1024
    vmem_limit = int(min(vmem_cap - (2 << 20), max(8 << 20, 2 * vmem_est)))

    flops = 2 * n * (2 * ocr) * k * m
    bytes_accessed = (n * hp * wp * c * 4 + 2 * ocr * k * 2 + 2 * ocr * 4
                      + n * ocr * m * 4)

    # Grid = (N,), one image per step; N=2 keeps both v7x TensorCores busy.
    # TODO(synk): for N == 1 / odd N or very large OH*OW, add a second parallel
    # axis over 128-aligned M tiles (keeps both v7x cores busy and blocks in VMEM).
    out = pl.pallas_call(
        kern,
        out_shape=jax.ShapeDtypeStruct((n, ocr, m), jnp.float32),
        grid_spec=pltpu.PrefetchScalarGridSpec(
            num_scalar_prefetch=0,
            grid=(n,),
            in_specs=[
                pl.BlockSpec((None, hp, wp, c), lambda b: (b, 0, 0, 0)),
                pl.BlockSpec((2 * ocr, k), lambda b: (0, 0)),
                pl.BlockSpec((2 * ocr, 1), lambda b: (0, 0)),
            ],
            out_specs=pl.BlockSpec((None, ocr, m), lambda b: (b, 0, 0)),
            scratch_shapes=[pltpu.VMEM((oh, ow, k), jnp.float32)],
        ),
        compiler_params=pltpu.CompilerParams(
            dimension_semantics=("parallel",),
            vmem_limit_bytes=vmem_limit),
        cost_estimate=pl.CostEstimate(
            flops=flops,
            transcendentals=n * ocr * m,
            bytes_accessed=bytes_accessed),
    )(xp, wcat, bcat)

    # (N, OCr, OH*OW) is already channel-major: strip the row padding (no-op
    # when OC % 8 == 0) and reshape to NCHW for free -- no transpose epilogue.
    return out[:, :oc, :].reshape(n, oc, oh, ow)


def _reference(x, wh, bh, wg, bg, stride, padding, dilation):
    dn = lax.conv_dimension_numbers(x.shape, wh.shape, ("NCHW", "OIHW", "NCHW"))
    pad = [(padding[0], padding[0]), (padding[1], padding[1])]

    def conv(w):
        return lax.conv_general_dilated(x, w, stride, pad, rhs_dilation=dilation,
                                        dimension_numbers=dn,
                                        precision=lax.Precision.HIGHEST)

    h = conv(wh) + bh[None, :, None, None]
    g = conv(wg) + bg[None, :, None, None]
    return h * jax.nn.sigmoid(g)


if __name__ == "__main__":
    # module config: GatedConv2d(input_channels=4, output_channels=8,
    #                            kernel_size=3, stride=1, padding=1)
    N, C, H, W = 2, 4, 16, 16
    OC, KH, KW = 8, 3, 3
    stride, padding, dilation = (1, 1), (1, 1), (1, 1)

    key = jax.random.PRNGKey(0)
    kx, kwh, kbh, kwg, kbg = jax.random.split(key, 5)
    x = jax.random.normal(kx, (N, C, H, W), jnp.float32)
    # deterministic synthetic params (Conv2d shapes: (OC, C, KH, KW), (OC,))
    wh = jax.random.normal(kwh, (OC, C, KH, KW), jnp.float32) * 0.1
    bh = jax.random.normal(kbh, (OC,), jnp.float32) * 0.1
    wg = jax.random.normal(kwg, (OC, C, KH, KW), jnp.float32) * 0.1
    bg = jax.random.normal(kbg, (OC,), jnp.float32) * 0.1

    out = gated_conv2d(x, wh, bh, wg, bg,
                       kernel_size=(KH, KW), stride=stride,
                       padding=padding, dilation=dilation)
    out = jax.block_until_ready(out)
    assert out.shape == (N, OC, H, W), out.shape
    assert out.dtype == jnp.float32, out.dtype

    # Tight check vs. a reference using the same bf16-rounded MXU operands
    # (f32 accumulation) -- isolates kernel correctness from the deliberate
    # bf16 cast of the matmul inputs.
    rb = lambda a: a.astype(jnp.bfloat16).astype(jnp.float32)
    ref_bf16 = _reference(rb(x), rb(wh), bh, rb(wg), bg, stride, padding, dilation)
    assert jnp.allclose(out, ref_bf16, atol=1e-3, rtol=1e-3), \
        "mismatch vs bf16-operand reference"

    # Loose check vs. the pure-f32 module semantics (bf16 MXU operands are the
    # only deliberate deviation).
    ref_f32 = _reference(x, wh, bh, wg, bg, stride, padding, dilation)
    assert jnp.allclose(out, ref_f32, atol=3e-2, rtol=3e-2), \
        "mismatch vs f32 reference"

    print("KERNEL_OK")
</pallas_src>

<mosaic_0001>
module attributes {stable_mosaic.version = 11 : i64} {
  func.func @_gated_conv_kernel(%arg0: i32, %arg1: memref<1x18x18x4xf32, #tpu.memory_space<vmem>>, %arg2: memref<16x36xbf16, #tpu.memory_space<vmem>>, %arg3: memref<16x1xf32, #tpu.memory_space<vmem>>, %arg4: memref<1x8x256xf32, #tpu.memory_space<vmem>>, %arg5: memref<16x16x36xf32, #tpu.memory_space<vmem>>) attributes {dimension_semantics = [#tpu.dimension_semantics<parallel>], iteration_bounds = array<i64: 2>, scalar_prefetch = 0 : i64, scratch_operands = 1 : i64, tpu.core_type = #tpu.core_type<tc>, window_params = [{transform_indices = @transform_0, window_bounds = array<i64: 1, 18, 18, 4>}, {pipeline_mode = #tpu.pipeline_mode<synchronous>, transform_indices = @transform_1, window_bounds = array<i64: 16, 36>}, {pipeline_mode = #tpu.pipeline_mode<synchronous>, transform_indices = @transform_2, window_bounds = array<i64: 16, 1>}, {transform_indices = @transform_3, window_bounds = array<i64: 1, 8, 256>}]} {
    %c0 = arith.constant 0 : index
    %c0_0 = arith.constant 0 : index
    %c0_1 = arith.constant 0 : index
    %c0_2 = arith.constant 0 : index
    %0 = vector.load %arg1[%c0, %c0_0, %c0_1, %c0_2] : memref<1x18x18x4xf32, #tpu.memory_space<vmem>>, vector<1x16x16x4xf32>
    %1 = vector.shape_cast %0 : vector<1x16x16x4xf32> to vector<16x16x4xf32>
    %c0_3 = arith.constant 0 : index
    %c0_4 = arith.constant 0 : index
    %c0_5 = arith.constant 0 : index
    %2 = vector.load %arg5[%c0_3, %c0_4, %c0_5] : memref<16x16x36xf32, #tpu.memory_space<vmem>>, vector<16x16x4xf32>
    tpu.vector_store %arg5[%c0_3, %c0_4, %c0_5], %1 {strides = array<i32>} : memref<16x16x36xf32, #tpu.memory_space<vmem>>, vector<16x16x4xf32>,
    %c0_6 = arith.constant 0 : index
    %c0_7 = arith.constant 0 : index
    %c1 = arith.constant 1 : index
    %c0_8 = arith.constant 0 : index
    %3 = vector.load %arg1[%c0_6, %c0_7, %c1, %c0_8] : memref<1x18x18x4xf32, #tpu.memory_space<vmem>>, vector<1x16x16x4xf32>
    %4 = vector.shape_cast %3 : vector<1x16x16x4xf32> to vector<16x16x4xf32>
    %c0_9 = arith.constant 0 : index
    %c0_10 = arith.constant 0 : index
    %c4 = arith.constant 4 : index
    %5 = vector.load %arg5[%c0_9, %c0_10, %c4] : memref<16x16x36xf32, #tpu.memory_space<vmem>>, vector<16x16x4xf32>
    tpu.vector_store %arg5[%c0_9, %c0_10, %c4], %4 {strides = array<i32>} : memref<16x16x36xf32, #tpu.memory_space<vmem>>, vector<16x16x4xf32>,
    %c0_11 = arith.constant 0 : index
    %c0_12 = arith.constant 0 : index
    %c2 = arith.constant 2 : index
    %c0_13 = arith.constant 0 : index
    %6 = vector.load %arg1[%c0_11, %c0_12, %c2, %c0_13] : memref<1x18x18x4xf32, #tpu.memory_space<vmem>>, vector<1x16x16x4xf32>
    %7 = vector.shape_cast %6 : vector<1x16x16x4xf32> to vector<16x16x4xf32>
    %c0_14 = arith.constant 0 : index
    %c0_15 = arith.constant 0 : index
    %c8 = arith.constant 8 : index
    %8 = vector.load %arg5[%c0_14, %c0_15, %c8] : memref<16x16x36xf32, #tpu.memory_space<vmem>>, vector<16x16x4xf32>
    tpu.vector_store %arg5[%c0_14, %c0_15, %c8], %7 {strides = array<i32>} : memref<16x16x36xf32, #tpu.memory_space<vmem>>, vector<16x16x4xf32>,
    %c0_16 = arith.constant 0 : index
    %c1_17 = arith.constant 1 : index
    %c0_18 = arith.constant 0 : index
    %c0_19 = arith.constant 0 : index
    %9 = vector.load %arg1[%c0_16, %c1_17, %c0_18, %c0_19] : memref<1x18x18x4xf32, #tpu.memory_space<vmem>>, vector<1x16x16x4xf32>
    %10 = vector.shape_cast %9 : vector<1x16x16x4xf32> to vector<16x16x4xf32>
    %c0_20 = arith.constant 0 : index
    %c0_21 = arith.constant 0 : index
    %c12 = arith.constant 12 : index
    %11 = vector.load %arg5[%c0_20, %c0_21, %c12] : memref<16x16x36xf32, #tpu.memory_space<vmem>>, vector<16x16x4xf32>
    tpu.vector_store %arg5[%c0_20, %c0_21, %c12], %10 {strides = array<i32>} : memref<16x16x36xf32, #tpu.memory_space<vmem>>, vector<16x16x4xf32>,
    %c0_22 = arith.constant 0 : index
    %c1_23 = arith.constant 1 : index
    %c1_24 = arith.constant 1 : index
    %c0_25 = arith.constant 0 : index
    %12 = vector.load %arg1[%c0_22, %c1_23, %c1_24, %c0_25] : memref<1x18x18x4xf32, #tpu.memory_space<vmem>>, vector<1x16x16x4xf32>
    %13 = vector.shape_cast %12 : vector<1x16x16x4xf32> to vector<16x16x4xf32>
    %c0_26 = arith.constant 0 : index
    %c0_27 = arith.constant 0 : index
    %c16 = arith.constant 16 : index
    %14 = vector.load %arg5[%c0_26, %c0_27, %c16] : memref<16x16x36xf32, #tpu.memory_space<vmem>>, vector<16x16x4xf32>
    tpu.vector_store %arg5[%c0_26, %c0_27, %c16], %13 {strides = array<i32>} : memref<16x16x36xf32, #tpu.memory_space<vmem>>, vector<16x16x4xf32>,
    %c0_28 = arith.constant 0 : index
    %c1_29 = arith.constant 1 : index
    %c2_30 = arith.constant 2 : index
    %c0_31 = arith.constant 0 : index
    %15 = vector.load %arg1[%c0_28, %c1_29, %c2_30, %c0_31] : memref<1x18x18x4xf32, #tpu.memory_space<vmem>>, vector<1x16x16x4xf32>
    %16 = vector.shape_cast %15 : vector<1x16x16x4xf32> to vector<16x16x4xf32>
    %c0_32 = arith.constant 0 : index
    %c0_33 = arith.constant 0 : index
    %c20 = arith.constant 20 : index
    %17 = vector.load %arg5[%c0_32, %c0_33, %c20] : memref<16x16x36xf32, #tpu.memory_space<vmem>>, vector<16x16x4xf32>
    tpu.vector_store %arg5[%c0_32, %c0_33, %c20], %16 {strides = array<i32>} : memref<16x16x36xf32, #tpu.memory_space<vmem>>, vector<16x16x4xf32>,
    %c0_34 = arith.constant 0 : index
    %c2_35 = arith.constant 2 : index
    %c0_36 = arith.constant 0 : index
    %c0_37 = arith.constant 0 : index
    %18 = vector.load %arg1[%c0_34, %c2_35, %c0_36, %c0_37] : memref<1x18x18x4xf32, #tpu.memory_space<vmem>>, vector<1x16x16x4xf32>
    %19 = vector.shape_cast %18 : vector<1x16x16x4xf32> to vector<16x16x4xf32>
    %c0_38 = arith.constant 0 : index
    %c0_39 = arith.constant 0 : index
    %c24 = arith.constant 24 : index
    %20 = vector.load %arg5[%c0_38, %c0_39, %c24] : memref<16x16x36xf32, #tpu.memory_space<vmem>>, vector<16x16x4xf32>
    tpu.vector_store %arg5[%c0_38, %c0_39, %c24], %19 {strides = array<i32>} : memref<16x16x36xf32, #tpu.memory_space<vmem>>, vector<16x16x4xf32>,
    %c0_40 = arith.constant 0 : index
    %c2_41 = arith.constant 2 : index
    %c1_42 = arith.constant 1 : index
    %c0_43 = arith.constant 0 : index
    %21 = vector.load %arg1[%c0_40, %c2_41, %c1_42, %c0_43] : memref<1x18x18x4xf32, #tpu.memory_space<vmem>>, vector<1x16x16x4xf32>
    %22 = vector.shape_cast %21 : vector<1x16x16x4xf32> to vector<16x16x4xf32>
    %c0_44 = arith.constant 0 : index
    %c0_45 = arith.constant 0 : index
    %c28 = arith.constant 28 : index
    %23 = vector.load %arg5[%c0_44, %c0_45, %c28] : memref<16x16x36xf32, #tpu.memory_space<vmem>>, vector<16x16x4xf32>
    tpu.vector_store %arg5[%c0_44, %c0_45, %c28], %22 {strides = array<i32>} : memref<16x16x36xf32, #tpu.memory_space<vmem>>, vector<16x16x4xf32>,
    %c0_46 = arith.constant 0 : index
    %c2_47 = arith.constant 2 : index
    %c2_48 = arith.constant 2 : index
    %c0_49 = arith.constant 0 : index
    %24 = vector.load %arg1[%c0_46, %c2_47, %c2_48, %c0_49] : memref<1x18x18x4xf32, #tpu.memory_space<vmem>>, vector<1x16x16x4xf32>
    %25 = vector.shape_cast %24 : vector<1x16x16x4xf32> to vector<16x16x4xf32>
    %c0_50 = arith.constant 0 : index
    %c0_51 = arith.constant 0 : index
    %c32 = arith.constant 32 : index
    %26 = vector.load %arg5[%c0_50, %c0_51, %c32] : memref<16x16x36xf32, #tpu.memory_space<vmem>>, vector<16x16x4xf32>
    tpu.vector_store %arg5[%c0_50, %c0_51, %c32], %25 {strides = array<i32>} : memref<16x16x36xf32, #tpu.memory_space<vmem>>, vector<16x16x4xf32>,
    %c0_52 = arith.constant 0 : index
    %c0_53 = arith.constant 0 : index
    %c0_54 = arith.constant 0 : index
    %27 = vector.load %arg5[%c0_52, %c0_53, %c0_54] : memref<16x16x36xf32, #tpu.memory_space<vmem>>, vector<16x16x36xf32>
    %28 = vector.shape_cast %27 : vector<16x16x36xf32> to vector<256x36xf32>
    %29 = arith.truncf %28 : vector<256x36xf32> to vector<256x36xbf16>
    %c0_55 = arith.constant 0 : index
    %c0_56 = arith.constant 0 : index
    %30 = vector.load %arg2[%c0_55, %c0_56] : memref<16x36xbf16, #tpu.memory_space<vmem>>, vector<16x36xbf16>
    %cst = arith.constant dense<0.000000e+00> : vector<16x256xf32>
    %31 = tpu.matmul %30, %29, %cst {dimension_numbers = #tpu.dot_dimension_numbers<[1], [1], [0], [0], [0, 0, 1, 0], [], []>} : vector<16x36xbf16>, vector<256x36xbf16>, vector<16x256xf32> -> vector<16x256xf32>
    %c0_57 = arith.constant 0 : index
    %c0_58 = arith.constant 0 : index
    %32 = vector.load %arg3[%c0_57, %c0_58] : memref<16x1xf32, #tpu.memory_space<vmem>>, vector<16x1xf32>
    %33 = vector.broadcast %32 : vector<16x1xf32> to vector<16x256xf32>
    %34 = arith.addf %31, %33 : vector<16x256xf32>
    %35 = vector.extract_strided_slice %34 {offsets = [0, 0], sizes = [8, 256], strides = [1, 1]} : vector<16x256xf32> to vector<8x256xf32>
    %36 = vector.extract_strided_slice %34 {offsets = [8, 0], sizes = [8, 256], strides = [1, 1]} : vector<16x256xf32> to vector<8x256xf32>
    %37 = arith.negf %36 : vector<8x256xf32>
    %38 = math.exp %37 : vector<8x256xf32>
    %cst_59 = arith.constant 1.000000e+00 : f32
    %39 = vector.broadcast %cst_59 : f32 to vector<8x256xf32>
    %40 = arith.addf %39, %38 : vector<8x256xf32>
    %41 = arith.divf %39, %40 : vector<8x256xf32>
    %42 = arith.mulf %35, %41 : vector<8x256xf32>
    %c0_60 = arith.constant 0 : index
    %c0_61 = arith.constant 0 : index
    %c0_62 = arith.constant 0 : index
    %43 = vector.load %arg4[%c0_60, %c0_61, %c0_62] : memref<1x8x256xf32, #tpu.memory_space<vmem>>, vector<1x8x256xf32>
    %44 = vector.shape_cast %43 : vector<1x8x256xf32> to vector<8x256xf32>
    %45 = vector.shape_cast %42 : vector<8x256xf32> to vector<1x8x256xf32>
    tpu.vector_store %arg4[%c0_60, %c0_61, %c0_62], %45 {strides = array<i32>} : memref<1x8x256xf32, #tpu.memory_space<vmem>>, vector<1x8x256xf32>,
    return
  }
  func.func @transform_0(%arg0: i32) -> (i32, i32, i32, i32) {
    %c0_i32 = arith.constant 0 : i32
    %c0_i32_0 = arith.constant 0 : i32
    %c0_i32_1 = arith.constant 0 : i32
    %c0_i32_2 = arith.constant 0 : i32
    return %arg0, %c0_i32, %c0_i32_0, %c0_i32_1 : i32, i32, i32, i32
  }
  func.func @transform_1(%arg0: i32) -> (i32, i32) {
    %c0_i32 = arith.constant 0 : i32
    %c0_i32_0 = arith.constant 0 : i32
    %c0_i32_1 = arith.constant 0 : i32
    return %c0_i32, %c0_i32_0 : i32, i32
  }
  func.func @transform_2(%arg0: i32) -> (i32, i32) {
    %c0_i32 = arith.constant 0 : i32
    %c0_i32_0 = arith.constant 0 : i32
    %c0_i32_1 = arith.constant 0 : i32
    return %c0_i32, %c0_i32_0 : i32, i32
  }
  func.func @transform_3(%arg0: i32) -> (i32, i32, i32) {
    %c0_i32 = arith.constant 0 : i32
    %c0_i32_0 = arith.constant 0 : i32
    %c0_i32_1 = arith.constant 0 : i32
    return %arg0, %c0_i32, %c0_i32_0 : i32, i32, i32
  }
}

</mosaic_0001>

<llo_original>
// kernel: gated_conv2d.1
$region0: #{gated_conv2d.1}
  #allocation0 [shape = 'u32[]', space=smem, size = 0x4, offset = 0x4, fixed_abs, tag = 'smem constant byte address 0x4 - core index']
  #allocation1 [shape = 'u32[144,128]{1,0:T(1,128)}', space=vmem, size = 0x12000, scoped, tag = 'internal scratch']
  #allocation2 [shape = 'f32[16,16,36]{2,1,0:T(8,128)}', space=vmem, size = 0x20000, scoped, tag = 'scratch operand']
  %s0 = inlined_call_operand.vmem [shape: f32[2,18,18,4], index: 0, kind: input, shape index: {}]
  %s1 = inlined_call_operand.vmem [shape: bf16[16,36], index: 1, kind: input, shape index: {}]
  %s2 = inlined_call_operand.vmem [shape: f32[16,1], index: 2, kind: input, shape index: {}]
  %s3 = inlined_call_operand.vmem [shape: f32[2,8,256], index: 3, kind: output, shape index: {}]
  %s4 = sld [smem:[#allocation0]]
  $region45: #{gated_conv2d.1} parent=0
    _
  %s6 = ssub.s32 1, %s4
  %s7 = scalar_select 0, %s6, %s4
  loop: start=0, step=1, limit=4
  $region2: #{gated_conv2d.1} parent=0 // loop_pre_header
    _
  $region3: #{gated_conv2d.1} parent=0 // loop_header
    %s9 = sphi 0, %s13
    %p10 = scmp.ge.s32.totalorder %s9, 4
    %s19 = sphi 0, %s21
    %s22 = sphi 0, %s19
    %s23 = sphi 0, %s22
    %s39 = sphi 0, %s23
    %s43 = sphi 0, %s43
    %s45 = sphi 0, %s43
    %s46 = sphi 0, %s45
    %s60 = sphi 0, %s46
    %s64 = sphi 0, %s64
    %s66 = sphi 0, %s64
    %s67 = sphi 0, %s66
    %s81 = sphi 0, %s67
    %s87 = sphi 0, %s89
    %s90 = sphi 0, %s87
    %s91 = sphi 0, %s90
    %s107 = sphi 0, %s91
  $region4: #{gated_conv2d.1} parent=0 // loop_header_branch
    %12 = sbr.rel (%p10) target = $region8
  $region5: #{gated_conv2d.1} parent=0 // loop_body
    %s14 = ssub.s32 %s9, 1
    %s15 = ssub.s32 %s9, 2
    %s16 = sadd.s32 %s9, 1
    %s17 = ssub.s32 %s9, %s16
    %p18 = scmp.eq.s32.totalorder %s17, 0
    %s20 = sadd.s32 %s19, 1
    %s21 = scalar_select %p18, %s19, %s20
    %p24 = pneg %p18
    %p25 = scmp.eq.s32.totalorder %s9, 1
    %p26 = por %p24, %p25
    %p27 = scmp.ne.s32.totalorder %s19, %s22
    %p28 = scmp.eq.s32.totalorder %s9, 0
    %p29 = por %p27, %p28
    %p30 = scmp.ne.s32.totalorder %s19, %s22
    %p31 = scmp.eq.s32.totalorder %s14, 1
    %p32 = por %p30, %p31
    %p33 = scmp.ne.s32.totalorder %s22, %s23
    %p34 = scmp.eq.s32.totalorder %s14, 0
    %p35 = por %p33, %p34
    %p36 = scmp.ne.s32.totalorder %s22, %s23
    %p37 = scmp.eq.s32.totalorder %s15, 1
    %p38 = por %p36, %p37
    %p40 = scmp.ne.s32.totalorder %s23, %s39
    %p41 = scmp.eq.s32.totalorder %s15, 0
    %p42 = por %p40, %p41
    %s44 = sadd.s32 %s43, 1
    %p47 = scmp.eq.s32.totalorder %s9, 1
    %p48 = scmp.ne.s32.totalorder %s43, %s45
    %p49 = scmp.eq.s32.totalorder %s9, 0
    %p50 = por %p48, %p49
    %p51 = scmp.ne.s32.totalorder %s43, %s45
    %p52 = scmp.eq.s32.totalorder %s14, 1
    %p53 = por %p51, %p52
    %p54 = scmp.ne.s32.totalorder %s45, %s46
    %p55 = scmp.eq.s32.totalorder %s14, 0
    %p56 = por %p54, %p55
    %p57 = scmp.ne.s32.totalorder %s45, %s46
    %p58 = scmp.eq.s32.totalorder %s15, 1
    %p59 = por %p57, %p58
    %p61 = scmp.ne.s32.totalorder %s46, %s60
    %p62 = scmp.eq.s32.totalorder %s15, 0
    %p63 = por %p61, %p62
    %s65 = sadd.s32 %s64, 1
    %p68 = scmp.eq.s32.totalorder %s9, 1
    %p69 = scmp.ne.s32.totalorder %s64, %s66
    %p70 = scmp.eq.s32.totalorder %s9, 0
    %p71 = por %p69, %p70
    %p72 = scmp.ne.s32.totalorder %s64, %s66
    %p73 = scmp.eq.s32.totalorder %s14, 1
    %p74 = por %p72, %p73
    %p75 = scmp.ne.s32.totalorder %s66, %s67
    %p76 = scmp.eq.s32.totalorder %s14, 0
    %p77 = por %p75, %p76
    %p78 = scmp.ne.s32.totalorder %s66, %s67
    %p79 = scmp.eq.s32.totalorder %s15, 1
    %p80 = por %p78, %p79
    %p82 = scmp.ne.s32.totalorder %s67, %s81
    %p83 = scmp.eq.s32.totalorder %s15, 0
    %p84 = por %p82, %p83
    %s85 = ssub.s32 %s9, %s16
    %p86 = scmp.eq.s32.totalorder %s85, 0
    %s88 = sadd.s32 %s87, 1
    %s89 = scalar_select %p86, %s87, %s88
    %p92 = pneg %p86
    %p93 = scmp.eq.s32.totalorder %s9, 1
    %p94 = por %p92, %p93
    %p95 = scmp.ne.s32.totalorder %s87, %s90
    %p96 = scmp.eq.s32.totalorder %s9, 0
    %p97 = por %p95, %p96
    %p98 = scmp.ne.s32.totalorder %s87, %s90
    %p99 = scmp.eq.s32.totalorder %s14, 1
    %p100 = por %p98, %p99
    %p101 = scmp.ne.s32.totalorder %s90, %s91
    %p102 = scmp.eq.s32.totalorder %s14, 0
    %p103 = por %p101, %p102
    %p104 = scmp.ne.s32.totalorder %s90, %s91
    %p105 = scmp.eq.s32.totalorder %s15, 1
    %p106 = por %p104, %p105
    %p108 = scmp.ne.s32.totalorder %s91, %s107
    %p109 = scmp.eq.s32.totalorder %s15, 0
    %p110 = por %p108, %p109
    %p111 = scmp.le.s32.totalorder 1, %s9
    %p112 = scmp.lt.s32.totalorder %s9, 3
    %p113 = pnand %p111, %p112
    %p114 = pneg %p113
    // Predicated region
    $region9: #{gated_conv2d.1} parent=5 // pred_check
      _
    $region10: #{gated_conv2d.1} parent=5 // pred_check_branch
      %116 = sbr.rel (%p113) target = $region12
    $region11: #{gated_conv2d.1} parent=5 // pred_region
      %s117 = ssub.s32 %s9, 1
      // Predicated region
      $region13: #{gated_conv2d.1} parent=11 // pred_check
        %p118 = pneg %p56
      $region14: #{gated_conv2d.1} parent=11 // pred_check_branch
        %120 = sbr.rel (%p118) target = $region16
      $region15: #{gated_conv2d.1} parent=11 // pred_region
        _
      $region16: #{gated_conv2d.1} parent=11 // pred_fallthru
        _
      // Predicated region
      $region17: #{gated_conv2d.1} parent=11 // pred_check
        %p121 = pneg %p77
      $region18: #{gated_conv2d.1} parent=11 // pred_check_branch
        %123 = sbr.rel (%p121) target = $region20
      $region19: #{gated_conv2d.1} parent=11 // pred_region
        _
      $region20: #{gated_conv2d.1} parent=11 // pred_fallthru
        _
    $region12: #{gated_conv2d.1} parent=5 // pred_fallthru
      _
    %p124 = scmp.lt.s32.totalorder %s9, 2
    // Predicated region
    $region21: #{gated_conv2d.1} parent=5 // pred_check
      %p125 = pneg %p124
    $region22: #{gated_conv2d.1} parent=5 // pred_check_branch
      %127 = sbr.rel (%p125) target = $region24
    $region23: #{gated_conv2d.1} parent=5 // pred_region
      // Predicated region
      $region25: #{gated_conv2d.1} parent=23 // pred_check
        %p128 = pneg %p29
      $region26: #{gated_conv2d.1} parent=23 // pred_check_branch
        %130 = sbr.rel (%p128) target = $region28
      $region27: #{gated_conv2d.1} parent=23 // pred_region
        %p131 = scmp.lt.s32.totalorder %s9, 1
        %s132 = scalar_select %p131, %s9, 1
        %s133 = smul.addr %s132, 54
        %s134 = smul.addr %s133, 8
        %s135 = scalar_lea.vmem %s0, %s134
      $region28: #{gated_conv2d.1} parent=23 // pred_fallthru
        _
    $region24: #{gated_conv2d.1} parent=5 // pred_fallthru
      _
    %p136 = scmp.le.s32.totalorder 1, %s9
    %p137 = scmp.lt.s32.totalorder %s9, 3
    %p138 = pnand %p136, %p137
    %p139 = pneg %p138
    // Predicated region
    $region29: #{gated_conv2d.1} parent=5 // pred_check
      _
    $region30: #{gated_conv2d.1} parent=5 // pred_check_branch
      %141 = sbr.rel (%p138) target = $region32
    $region31: #{gated_conv2d.1} parent=5 // pred_region
      %s142 = ssub.s32 %s9, 1
      %p143 = scmp.lt.s32.totalorder %s14, 1
      %s144 = scalar_select %p143, %s14, 1
      %s145 = smul.addr %s144, 54
      %s146 = smul.addr %s145, 8
      %s147 = scalar_lea.vmem %s0, %s146
      %p148 = pneg %p35
      %p149 = pneg %p32
      %p150 = pneg %p56
      %p151 = pneg %p53
      %p152 = pneg %p77
      %p153 = pneg %p74
      %p154 = pneg %p103
      %p155 = pneg %p100
      %p156 = scmp.lt.s32.totalorder %s14, 1
      %s157 = scalar_select %p156, %s14, 1
      %s158 = smul.addr %s157, 2
      %s159 = smul.addr %s158, 8
      %s160 = scalar_lea.vmem %s3, %s159
      %p161 = scmp.lt.s32.totalorder %s14, 1
      %s162 = scalar_select %p161, %s14, 1
      %s163 = smul.addr %s162, 54
      %s164 = smul.addr %s163, 8
      %s165 = scalar_lea.vmem %s0, %s164
      %p166 = scmp.lt.s32.totalorder %s14, 1
      %s167 = scalar_select %p166, %s14, 1
      %s168 = smul.addr %s167, 2
      %s169 = smul.addr %s168, 8
      %s170 = scalar_lea.vmem %s3, %s169
      %v172 = vld [vmem:[%s165] sm:$0xff]
      %v173 = vld [vmem:[%s165 + $0x8] sm:$0xff]
      %v174 = vld [vmem:[%s165 + $0x18] sm:$0xff]
      %v175 = vld [vmem:[%s165 + $0x20] sm:$0xff]
      %v176 = vld [vmem:[%s165 + $0x30] sm:$0xff]
      %v177 = vld [vmem:[%s165 + $0x38] sm:$0xff]
      %v178 = vld [vmem:[%s165 + $0x48] sm:$0xff]
      %v179 = vld [vmem:[%s165 + $0x50] sm:$0xff]
      %v180 = vld [vmem:[%s165 + $0x60] sm:$0xff]
      %v181 = vld [vmem:[%s165 + $0x68] sm:$0xff]
      %v182 = vld [vmem:[%s165 + $0x78] sm:$0xff]
      %v183 = vld [vmem:[%s165 + $0x80] sm:$0xff]
      %v184 = vld [vmem:[%s165 + $0x90] sm:$0xff]
      %v185 = vld [vmem:[%s165 + $0x98] sm:$0xff]
      %v186 = vld [vmem:[%s165 + $0xa8] sm:$0xff]
      %v187 = vld [vmem:[%s165 + $0xb0] sm:$0xff]
      %v188 = vld [vmem:[%s165 + $0xc0] sm:$0xff]
      %v189 = vld [vmem:[%s165 + $0xc8] sm:$0xff]
      %v190 = vld [vmem:[%s165 + $0xd8] sm:$0xff]
      %v191 = vld [vmem:[%s165 + $0xe0] sm:$0xff]
      %v192 = vld [vmem:[%s165 + $0xf0] sm:$0xff]
      %v193 = vld [vmem:[%s165 + $0xf8] sm:$0xff]
      %v194 = vld [vmem:[%s165 + $0x108] sm:$0xff]
      %v195 = vld [vmem:[%s165 + $0x110] sm:$0xff]
      %v196 = vld [vmem:[%s165 + $0x120] sm:$0xff]
      %v197 = vld [vmem:[%s165 + $0x128] sm:$0xff]
      %v198 = vld [vmem:[%s165 + $0x138] sm:$0xff]
      %v199 = vld [vmem:[%s165 + $0x140] sm:$0xff]
      %v200 = vld [vmem:[%s165 + $0x150] sm:$0xff]
      %v201 = vld [vmem:[%s165 + $0x158] sm:$0xff]
      %v202 = vld [vmem:[%s165 + $0x168] sm:$0xff]
      %v203 = vld [vmem:[%s165 + $0x170] sm:$0xff]
      %vm204 = vcmask 31744
      %205 = vst.msk [vmem:[#allocation2] sm:$0xff] %vm204, %v172
      %206 = vst.msk [vmem:[#allocation2 + $0x8] sm:$0xff] %vm204, %v173
      %207 = vst.msk [vmem:[#allocation2 + $0x10] sm:$0xff] %vm204, %v174
      %208 = vst.msk [vmem:[#allocation2 + $0x18] sm:$0xff] %vm204, %v175
      %209 = vst.msk [vmem:[#allocation2 + $0x20] sm:$0xff] %vm204, %v176
      %210 = vst.msk [vmem:[#allocation2 + $0x28] sm:$0xff] %vm204, %v177
      %211 = vst.msk [vmem:[#allocation2 + $0x30] sm:$0xff] %vm204, %v178
      %212 = vst.msk [vmem:[#allocation2 + $0x38] sm:$0xff] %vm204, %v179
      %213 = vst.msk [vmem:[#allocation2 + $0x40] sm:$0xff] %vm204, %v180
      %214 = vst.msk [vmem:[#allocation2 + $0x48] sm:$0xff] %vm204, %v181
      %215 = vst.msk [vmem:[#allocation2 + $0x50] sm:$0xff] %vm204, %v182
      %216 = vst.msk [vmem:[#allocation2 + $0x58] sm:$0xff] %vm204, %v183
      %217 = vst.msk [vmem:[#allocation2 + $0x60] sm:$0xff] %vm204, %v184
      %218 = vst.msk [vmem:[#allocation2 + $0x68] sm:$0xff] %vm204, %v185
      %219 = vst.msk [vmem:[#allocation2 + $0x70] sm:$0xff] %vm204, %v186
      %220 = vst.msk [vmem:[#allocation2 + $0x78] sm:$0xff] %vm204, %v187
      %221 = vst.msk [vmem:[#allocation2 + $0x80] sm:$0xff] %vm204, %v188
      %222 = vst.msk [vmem:[#allocation2 + $0x88] sm:$0xff] %vm204, %v189
      %223 = vst.msk [vmem:[#allocation2 + $0x90] sm:$0xff] %vm204, %v190
      %224 = vst.msk [vmem:[#allocation2 + $0x98] sm:$0xff] %vm204, %v191
      %225 = vst.msk [vmem:[#allocation2 + $0xa0] sm:$0xff] %vm204, %v192
      %226 = vst.msk [vmem:[#allocation2 + $0xa8] sm:$0xff] %vm204, %v193
      %227 = vst.msk [vmem:[#allocation2 + $0xb0] sm:$0xff] %vm204, %v194
      %228 = vst.msk [vmem:[#allocation2 + $0xb8] sm:$0xff] %vm204, %v195
      %229 = vst.msk [vmem:[#allocation2 + $0xc0] sm:$0xff] %vm204, %v196
      %230 = vst.msk [vmem:[#allocation2 + $0xc8] sm:$0xff] %vm204, %v197
      %231 = vst.msk [vmem:[#allocation2 + $0xd0] sm:$0xff] %vm204, %v198
      %232 = vst.msk [vmem:[#allocation2 + $0xd8] sm:$0xff] %vm204, %v199
      %233 = vst.msk [vmem:[#allocation2 + $0xe0] sm:$0xff] %vm204, %v200
      %234 = vst.msk [vmem:[#allocation2 + $0xe8] sm:$0xff] %vm204, %v201
      %235 = vst.msk [vmem:[#allocation2 + $0xf0] sm:$0xff] %vm204, %v202
      %236 = vst.msk [vmem:[#allocation2 + $0xf8] sm:$0xff] %vm204, %v203
      %v237 = vld [vmem:[%s165 + $0x1] sm:$0xff]
      %v238 = vld [vmem:[%s165 + $0x9] sm:$0xff]
      %v239 = vld [vmem:[%s165 + $0x19] sm:$0xff]
      %v240 = vld [vmem:[%s165 + $0x21] sm:$0xff]
      %v241 = vld [vmem:[%s165 + $0x31] sm:$0xff]
      %v242 = vld [vmem:[%s165 + $0x39] sm:$0xff]
      %v243 = vld [vmem:[%s165 + $0x49] sm:$0xff]
      %v244 = vld [vmem:[%s165 + $0x51] sm:$0xff]
      %v245 = vld [vmem:[%s165 + $0x61] sm:$0xff]
      %v246 = vld [vmem:[%s165 + $0x69] sm:$0xff]
      %v247 = vld [vmem:[%s165 + $0x79] sm:$0xff]
      %v248 = vld [vmem:[%s165 + $0x81] sm:$0xff]
      %v249 = vld [vmem:[%s165 + $0x91] sm:$0xff]
      %v250 = vld [vmem:[%s165 + $0x99] sm:$0xff]
      %v251 = vld [vmem:[%s165 + $0xa9] sm:$0xff]
      %v252 = vld [vmem:[%s165 + $0xb1] sm:$0xff]
      %v253 = vld [vmem:[%s165 + $0xc1] sm:$0xff]
      %v254 = vld [vmem:[%s165 + $0xc9] sm:$0xff]
      %v255 = vld [vmem:[%s165 + $0xd9] sm:$0xff]
      %v256 = vld [vmem:[%s165 + $0xe1] sm:$0xff]
      %v257 = vld [vmem:[%s165 + $0xf1] sm:$0xff]
      %v258 = vld [vmem:[%s165 + $0xf9] sm:$0xff]
      %v259 = vld [vmem:[%s165 + $0x109] sm:$0xff]
      %v260 = vld [vmem:[%s165 + $0x111] sm:$0xff]
      %v261 = vld [vmem:[%s165 + $0x121] sm:$0xff]
      %v262 = vld [vmem:[%s165 + $0x129] sm:$0xff]
      %v263 = vld [vmem:[%s165 + $0x139] sm:$0xff]
      %v264 = vld [vmem:[%s165 + $0x141] sm:$0xff]
      %v265 = vld [vmem:[%s165 + $0x151] sm:$0xff]
      %v266 = vld [vmem:[%s165 + $0x159] sm:$0xff]
      %v267 = vld [vmem:[%s165 + $0x169] sm:$0xff]
      %v268 = vld [vmem:[%s165 + $0x171] sm:$0xff]
      %301 = vrot.lane.b32.xlu0 %v237, 4
      %v302 = vpop.permute.xlu0 %301
      %303 = vrot.lane.b32.xlu0 %v238, 4
      %v304 = vpop.permute.xlu0 %303
      %305 = vrot.lane.b32.xlu0 %v239, 4
      %v306 = vpop.permute.xlu0 %305
      %307 = vrot.lane.b32.xlu0 %v240, 4
      %v308 = vpop.permute.xlu0 %307
      %309 = vrot.lane.b32.xlu0 %v241, 4
      %v310 = vpop.permute.xlu0 %309
      %311 = vrot.lane.b32.xlu0 %v242, 4
      %v312 = vpop.permute.xlu0 %311
      %313 = vrot.lane.b32.xlu0 %v243, 4
      %v314 = vpop.permute.xlu0 %313
      %315 = vrot.lane.b32.xlu0 %v244, 4
      %v316 = vpop.permute.xlu0 %315
      %317 = vrot.lane.b32.xlu0 %v245, 4
      %v318 = vpop.permute.xlu0 %317
      %319 = vrot.lane.b32.xlu0 %v246, 4
      %v320 = vpop.permute.xlu0 %319
      %321 = vrot.lane.b32.xlu0 %v247, 4
      %v322 = vpop.permute.xlu0 %321
      %323 = vrot.lane.b32.xlu0 %v248, 4
      %v324 = vpop.permute.xlu0 %323
      %325 = vrot.lane.b32.xlu0 %v249, 4
      %v326 = vpop.permute.xlu0 %325
      %327 = vrot.lane.b32.xlu0 %v250, 4
      %v328 = vpop.permute.xlu0 %327
      %329 = vrot.lane.b32.xlu0 %v251, 4
      %v330 = vpop.permute.xlu0 %329
      %331 = vrot.lane.b32.xlu0 %v252, 4
      %v332 = vpop.permute.xlu0 %331
      %333 = vrot.lane.b32.xlu0 %v253, 4
      %v334 = vpop.permute.xlu0 %333
      %335 = vrot.lane.b32.xlu0 %v254, 4
      %v336 = vpop.permute.xlu0 %335
      %337 = vrot.lane.b32.xlu0 %v255, 4
      %v338 = vpop.permute.xlu0 %337
      %339 = vrot.lane.b32.xlu0 %v256, 4
      %v340 = vpop.permute.xlu0 %339
      %341 = vrot.lane.b32.xlu0 %v257, 4
      %v342 = vpop.permute.xlu0 %341
      %343 = vrot.lane.b32.xlu0 %v258, 4
      %v344 = vpop.permute.xlu0 %343
      %345 = vrot.lane.b32.xlu0 %v259, 4
      %v346 = vpop.permute.xlu0 %345
      %347 = vrot.lane.b32.xlu0 %v260, 4
      %v348 = vpop.permute.xlu0 %347
      %349 = vrot.lane.b32.xlu0 %v261, 4
      %v350 = vpop.permute.xlu0 %349
      %351 = vrot.lane.b32.xlu0 %v262, 4
      %v352 = vpop.permute.xlu0 %351
      %353 = vrot.lane.b32.xlu0 %v263, 4
      %v354 = vpop.permute.xlu0 %353
      %355 = vrot.lane.b32.xlu0 %v264, 4
      %v356 = vpop.permute.xlu0 %355
      %357 = vrot.lane.b32.xlu0 %v265, 4
      %v358 = vpop.permute.xlu0 %357
      %359 = vrot.lane.b32.xlu0 %v266, 4
      %v360 = vpop.permute.xlu0 %359
      %361 = vrot.lane.b32.xlu0 %v267, 4
      %v362 = vpop.permute.xlu0 %361
      %363 = vrot.lane.b32.xlu0 %v268, 4
      %v364 = vpop.permute.xlu0 %363
      %vm397 = vcmask 64544
      %398 = vst.msk [vmem:[#allocation2] sm:$0xff] %vm397, %v302
      %399 = vst.msk [vmem:[#allocation2 + $0x8] sm:$0xff] %vm397, %v304
      %400 = vst.msk [vmem:[#allocation2 + $0x10] sm:$0xff] %vm397, %v306
      %401 = vst.msk [vmem:[#allocation2 + $0x18] sm:$0xff] %vm397, %v308
      %402 = vst.msk [vmem:[#allocation2 + $0x20] sm:$0xff] %vm397, %v310
      %403 = vst.msk [vmem:[#allocation2 + $0x28] sm:$0xff] %vm397, %v312
      %404 = vst.msk [vmem:[#allocation2 + $0x30] sm:$0xff] %vm397, %v314
      %405 = vst.msk [vmem:[#allocation2 + $0x38] sm:$0xff] %vm397, %v316
      %406 = vst.msk [vmem:[#allocation2 + $0x40] sm:$0xff] %vm397, %v318
      %407 = vst.msk [vmem:[#allocation2 + $0x48] sm:$0xff] %vm397, %v320
      %408 = vst.msk [vmem:[#allocation2 + $0x50] sm:$0xff] %vm397, %v322
      %409 = vst.msk [vmem:[#allocation2 + $0x58] sm:$0xff] %vm397, %v324
      %410 = vst.msk [vmem:[#allocation2 + $0x60] sm:$0xff] %vm397, %v326
      %411 = vst.msk [vmem:[#allocation2 + $0x68] sm:$0xff] %vm397, %v328
      %412 = vst.msk [vmem:[#allocation2 + $0x70] sm:$0xff] %vm397, %v330
      %413 = vst.msk [vmem:[#allocation2 + $0x78] sm:$0xff] %vm397, %v332
      %414 = vst.msk [vmem:[#allocation2 + $0x80] sm:$0xff] %vm397, %v334
      %415 = vst.msk [vmem:[#allocation2 + $0x88] sm:$0xff] %vm397, %v336
      %416 = vst.msk [vmem:[#allocation2 + $0x90] sm:$0xff] %vm397, %v338
      %417 = vst.msk [vmem:[#allocation2 + $0x98] sm:$0xff] %vm397, %v340
      %418 = vst.msk [vmem:[#allocation2 + $0xa0] sm:$0xff] %vm397, %v342
      %419 = vst.msk [vmem:[#allocation2 + $0xa8] sm:$0xff] %vm397, %v344
      %420 = vst.msk [vmem:[#allocation2 + $0xb0] sm:$0xff] %vm397, %v346
      %421 = vst.msk [vmem:[#allocation2 + $0xb8] sm:$0xff] %vm397, %v348
      %422 = vst.msk [vmem:[#allocation2 + $0xc0] sm:$0xff] %vm397, %v350
      %423 = vst.msk [vmem:[#allocation2 + $0xc8] sm:$0xff] %vm397, %v352
      %424 = vst.msk [vmem:[#allocation2 + $0xd0] sm:$0xff] %vm397, %v354
      %425 = vst.msk [vmem:[#allocation2 + $0xd8] sm:$0xff] %vm397, %v356
      %426 = vst.msk [vmem:[#allocation2 + $0xe0] sm:$0xff] %vm397, %v358
      %427 = vst.msk [vmem:[#allocation2 + $0xe8] sm:$0xff] %vm397, %v360
      %428 = vst.msk [vmem:[#allocation2 + $0xf0] sm:$0xff] %vm397, %v362
      %429 = vst.msk [vmem:[#allocation2 + $0xf8] sm:$0xff] %vm397, %v364
      %v430 = vld [vmem:[%s165 + $0x2] sm:$0xff]
      %v431 = vld [vmem:[%s165 + $0xa] sm:$0xff]
      %v432 = vld [vmem:[%s165 + $0x1a] sm:$0xff]
      %v433 = vld [vmem:[%s165 + $0x22] sm:$0xff]
      %v434 = vld [vmem:[%s165 + $0x32] sm:$0xff]
      %v435 = vld [vmem:[%s165 + $0x3a] sm:$0xff]
      %v436 = vld [vmem:[%s165 + $0x4a] sm:$0xff]
      %v437 = vld [vmem:[%s165 + $0x52] sm:$0xff]
      %v438 = vld [vmem:[%s165 + $0x62] sm:$0xff]
      %v439 = vld [vmem:[%s165 + $0x6a] sm:$0xff]
      %v440 = vld [vmem:[%s165 + $0x7a] sm:$0xff]
      %v441 = vld [vmem:[%s165 + $0x82] sm:$0xff]
      %v442 = vld [vmem:[%s165 + $0x92] sm:$0xff]
      %v443 = vld [vmem:[%s165 + $0x9a] sm:$0xff]
      %v444 = vld [vmem:[%s165 + $0xaa] sm:$0xff]
      %v445 = vld [vmem:[%s165 + $0xb2] sm:$0xff]
      %v446 = vld [vmem:[%s165 + $0xc2] sm:$0xff]
      %v447 = vld [vmem:[%s165 + $0xca] sm:$0xff]
      %v448 = vld [vmem:[%s165 + $0xda] sm:$0xff]
      %v449 = vld [vmem:[%s165 + $0xe2] sm:$0xff]
      %v450 = vld [vmem:[%s165 + $0xf2] sm:$0xff]
      %v451 = vld [vmem:[%s165 + $0xfa] sm:$0xff]
      %v452 = vld [vmem:[%s165 + $0x10a] sm:$0xff]
      %v453 = vld [vmem:[%s165 + $0x112] sm:$0xff]
      %v454 = vld [vmem:[%s165 + $0x122] sm:$0xff]
      %v455 = vld [vmem:[%s165 + $0x12a] sm:$0xff]
      %v456 = vld [vmem:[%s165 + $0x13a] sm:$0xff]
      %v457 = vld [vmem:[%s165 + $0x142] sm:$0xff]
      %v458 = vld [vmem:[%s165 + $0x152] sm:$0xff]
      %v459 = vld [vmem:[%s165 + $0x15a] sm:$0xff]
      %v460 = vld [vmem:[%s165 + $0x16a] sm:$0xff]
      %v461 = vld [vmem:[%s165 + $0x172] sm:$0xff]
      %494 = vrot.lane.b32.xlu0 %v430, 8
      %v495 = vpop.permute.xlu0 %494
      %496 = vrot.lane.b32.xlu0 %v431, 8
      %v497 = vpop.permute.xlu0 %496
      %498 = vrot.lane.b32.xlu0 %v432, 8
      %v499 = vpop.permute.xlu0 %498
      %500 = vrot.lane.b32.xlu0 %v433, 8
      %v501 = vpop.permute.xlu0 %500
      %502 = vrot.lane.b32.xlu0 %v434, 8
      %v503 = vpop.permute.xlu0 %502
      %504 = vrot.lane.b32.xlu0 %v435, 8
      %v505 = vpop.permute.xlu0 %504
      %506 = vrot.lane.b32.xlu0 %v436, 8
      %v507 = vpop.permute.xlu0 %506
      %508 = vrot.lane.b32.xlu0 %v437, 8
      %v509 = vpop.permute.xlu0 %508
      %510 = vrot.lane.b32.xlu0 %v438, 8
      %v511 = vpop.permute.xlu0 %510
      %512 = vrot.lane.b32.xlu0 %v439, 8
      %v513 = vpop.permute.xlu0 %512
      %514 = vrot.lane.b32.xlu0 %v440, 8
      %v515 = vpop.permute.xlu0 %514
      %516 = vrot.lane.b32.xlu0 %v441, 8
      %v517 = vpop.permute.xlu0 %516
      %518 = vrot.lane.b32.xlu0 %v442, 8
      %v519 = vpop.permute.xlu0 %518
      %520 = vrot.lane.b32.xlu0 %v443, 8
      %v521 = vpop.permute.xlu0 %520
      %522 = vrot.lane.b32.xlu0 %v444, 8
      %v523 = vpop.permute.xlu0 %522
      %524 = vrot.lane.b32.xlu0 %v445, 8
      %v525 = vpop.permute.xlu0 %524
      %526 = vrot.lane.b32.xlu0 %v446, 8
      %v527 = vpop.permute.xlu0 %526
      %528 = vrot.lane.b32.xlu0 %v447, 8
      %v529 = vpop.permute.xlu0 %528
      %530 = vrot.lane.b32.xlu0 %v448, 8
      %v531 = vpop.permute.xlu0 %530
      %532 = vrot.lane.b32.xlu0 %v449, 8
      %v533 = vpop.permute.xlu0 %532
      %534 = vrot.lane.b32.xlu0 %v450, 8
      %v535 = vpop.permute.xlu0 %534
      %536 = vrot.lane.b32.xlu0 %v451, 8
      %v537 = vpop.permute.xlu0 %536
      %538 = vrot.lane.b32.xlu0 %v452, 8
      %v539 = vpop.permute.xlu0 %538
      %540 = vrot.lane.b32.xlu0 %v453, 8
      %v541 = vpop.permute.xlu0 %540
      %542 = vrot.lane.b32.xlu0 %v454, 8
      %v543 = vpop.permute.xlu0 %542
      %544 = vrot.lane.b32.xlu0 %v455, 8
      %v545 = vpop.permute.xlu0 %544
      %546 = vrot.lane.b32.xlu0 %v456, 8
      %v547 = vpop.permute.xlu0 %546
      %548 = vrot.lane.b32.xlu0 %v457, 8
      %v549 = vpop.permute.xlu0 %548
      %550 = vrot.lane.b32.xlu0 %v458, 8
      %v551 = vpop.permute.xlu0 %550
      %552 = vrot.lane.b32.xlu0 %v459, 8
      %v553 = vpop.permute.xlu0 %552
      %554 = vrot.lane.b32.xlu0 %v460, 8
      %v555 = vpop.permute.xlu0 %554
      %556 = vrot.lane.b32.xlu0 %v461, 8
      %v557 = vpop.permute.xlu0 %556
      %vm590 = vcmask 97344
      %591 = vst.msk [vmem:[#allocation2] sm:$0xff] %vm590, %v495
      %592 = vst.msk [vmem:[#allocation2 + $0x8] sm:$0xff] %vm590, %v497
      %593 = vst.msk [vmem:[#allocation2 + $0x10] sm:$0xff] %vm590, %v499
      %594 = vst.msk [vmem:[#allocation2 + $0x18] sm:$0xff] %vm590, %v501
      %595 = vst.msk [vmem:[#allocation2 + $0x20] sm:$0xff] %vm590, %v503
      %596 = vst.msk [vmem:[#allocation2 + $0x28] sm:$0xff] %vm590, %v505
      %597 = vst.msk [vmem:[#allocation2 + $0x30] sm:$0xff] %vm590, %v507
      %598 = vst.msk [vmem:[#allocation2 + $0x38] sm:$0xff] %vm590, %v509
      %599 = vst.msk [vmem:[#allocation2 + $0x40] sm:$0xff] %vm590, %v511
      %600 = vst.msk [vmem:[#allocation2 + $0x48] sm:$0xff] %vm590, %v513
      %601 = vst.msk [vmem:[#allocation2 + $0x50] sm:$0xff] %vm590, %v515
      %602 = vst.msk [vmem:[#allocation2 + $0x58] sm:$0xff] %vm590, %v517
      %603 = vst.msk [vmem:[#allocation2 + $0x60] sm:$0xff] %vm590, %v519
      %604 = vst.msk [vmem:[#allocation2 + $0x68] sm:$0xff] %vm590, %v521
      %605 = vst.msk [vmem:[#allocation2 + $0x70] sm:$0xff] %vm590, %v523
      %606 = vst.msk [vmem:[#allocation2 + $0x78] sm:$0xff] %vm590, %v525
      %607 = vst.msk [vmem:[#allocation2 + $0x80] sm:$0xff] %vm590, %v527
      %608 = vst.msk [vmem:[#allocation2 + $0x88] sm:$0xff] %vm590, %v529
      %609 = vst.msk [vmem:[#allocation2 + $0x90] sm:$0xff] %vm590, %v531
      %610 = vst.msk [vmem:[#allocation2 + $0x98] sm:$0xff] %vm590, %v533
      %611 = vst.msk [vmem:[#allocation2 + $0xa0] sm:$0xff] %vm590, %v535
      %612 = vst.msk [vmem:[#allocation2 + $0xa8] sm:$0xff] %vm590, %v537
      %613 = vst.msk [vmem:[#allocation2 + $0xb0] sm:$0xff] %vm590, %v539
      %614 = vst.msk [vmem:[#allocation2 + $0xb8] sm:$0xff] %vm590, %v541
      %615 = vst.msk [vmem:[#allocation2 + $0xc0] sm:$0xff] %vm590, %v543
      %616 = vst.msk [vmem:[#allocation2 + $0xc8] sm:$0xff] %vm590, %v545
      %617 = vst.msk [vmem:[#allocation2 + $0xd0] sm:$0xff] %vm590, %v547
      %618 = vst.msk [vmem:[#allocation2 + $0xd8] sm:$0xff] %vm590, %v549
      %619 = vst.msk [vmem:[#allocation2 + $0xe0] sm:$0xff] %vm590, %v551
      %620 = vst.msk [vmem:[#allocation2 + $0xe8] sm:$0xff] %vm590, %v553
      %621 = vst.msk [vmem:[#allocation2 + $0xf0] sm:$0xff] %vm590, %v555
      %622 = vst.msk [vmem:[#allocation2 + $0xf8] sm:$0xff] %vm590, %v557
      %s623 = scalar_lea.vmem %s165, 24
      %v624 = vld [vmem:[%s623] sm:$0xff]
      %v625 = vld [vmem:[%s623 + $0x8] sm:$0xff]
      %v626 = vld [vmem:[%s623 + $0x18] sm:$0xff]
      %v627 = vld [vmem:[%s623 + $0x20] sm:$0xff]
      %v628 = vld [vmem:[%s623 + $0x30] sm:$0xff]
      %v629 = vld [vmem:[%s623 + $0x38] sm:$0xff]
      %v630 = vld [vmem:[%s623 + $0x48] sm:$0xff]
      %v631 = vld [vmem:[%s623 + $0x50] sm:$0xff]
      %v632 = vld [vmem:[%s623 + $0x60] sm:$0xff]
      %v633 = vld [vmem:[%s623 + $0x68] sm:$0xff]
      %v634 = vld [vmem:[%s623 + $0x78] sm:$0xff]
      %v635 = vld [vmem:[%s623 + $0x80] sm:$0xff]
      %v636 = vld [vmem:[%s623 + $0x90] sm:$0xff]
      %v637 = vld [vmem:[%s623 + $0x98] sm:$0xff]
      %v638 = vld [vmem:[%s623 + $0xa8] sm:$0xff]
      %v639 = vld [vmem:[%s623 + $0xb0] sm:$0xff]
      %v640 = vld [vmem:[%s623 + $0xc0] sm:$0xff]
      %v641 = vld [vmem:[%s623 + $0xc8] sm:$0xff]
      %v642 = vld [vmem:[%s623 + $0xd8] sm:$0xff]
      %v643 = vld [vmem:[%s623 + $0xe0] sm:$0xff]
      %v644 = vld [vmem:[%s623 + $0xf0] sm:$0xff]
      %v645 = vld [vmem:[%s623 + $0xf8] sm:$0xff]
      %v646 = vld [vmem:[%s623 + $0x108] sm:$0xff]
      %v647 = vld [vmem:[%s623 + $0x110] sm:$0xff]
      %v648 = vld [vmem:[%s623 + $0x120] sm:$0xff]
      %v649 = vld [vmem:[%s623 + $0x128] sm:$0xff]
      %v650 = vld [vmem:[%s623 + $0x138] sm:$0xff]
      %v651 = vld [vmem:[%s623 + $0x140] sm:$0xff]
      %v652 = vld [vmem:[%s623 + $0x150] sm:$0xff]
      %v653 = vld [vmem:[%s623 + $0x158] sm:$0xff]
      %v654 = vld [vmem:[%s623 + $0x168] sm:$0xff]
      %v655 = vld [vmem:[%s623 + $0x170] sm:$0xff]
      %688 = vrot.lane.b32.xlu0 %v624, 12
      %v689 = vpop.permute.xlu0 %688
      %690 = vrot.lane.b32.xlu0 %v625, 12
      %v691 = vpop.permute.xlu0 %690
      %692 = vrot.lane.b32.xlu0 %v626, 12
      %v693 = vpop.permute.xlu0 %692
      %694 = vrot.lane.b32.xlu0 %v627, 12
      %v695 = vpop.permute.xlu0 %694
      %696 = vrot.lane.b32.xlu0 %v628, 12
      %v697 = vpop.permute.xlu0 %696
      %698 = vrot.lane.b32.xlu0 %v629, 12
      %v699 = vpop.permute.xlu0 %698
      %700 = vrot.lane.b32.xlu0 %v630, 12
      %v701 = vpop.permute.xlu0 %700
      %702 = vrot.lane.b32.xlu0 %v631, 12
      %v703 = vpop.permute.xlu0 %702
      %704 = vrot.lane.b32.xlu0 %v632, 12
      %v705 = vpop.permute.xlu0 %704
      %706 = vrot.lane.b32.xlu0 %v633, 12
      %v707 = vpop.permute.xlu0 %706
      %708 = vrot.lane.b32.xlu0 %v634, 12
      %v709 = vpop.permute.xlu0 %708
      %710 = vrot.lane.b32.xlu0 %v635, 12
      %v711 = vpop.permute.xlu0 %710
      %712 = vrot.lane.b32.xlu0 %v636, 12
      %v713 = vpop.permute.xlu0 %712
      %714 = vrot.lane.b32.xlu0 %v637, 12
      %v715 = vpop.permute.xlu0 %714
      %716 = vrot.lane.b32.xlu0 %v638, 12
      %v717 = vpop.permute.xlu0 %716
      %718 = vrot.lane.b32.xlu0 %v639, 12
      %v719 = vpop.permute.xlu0 %718
      %720 = vrot.lane.b32.xlu0 %v640, 12
      %v721 = vpop.permute.xlu0 %720
      %722 = vrot.lane.b32.xlu0 %v641, 12
      %v723 = vpop.permute.xlu0 %722
      %724 = vrot.lane.b32.xlu0 %v642, 12
      %v725 = vpop.permute.xlu0 %724
      %726 = vrot.lane.b32.xlu0 %v643, 12
      %v727 = vpop.permute.xlu0 %726
      %728 = vrot.lane.b32.xlu0 %v644, 12
      %v729 = vpop.permute.xlu0 %728
      %730 = vrot.lane.b32.xlu0 %v645, 12
      %v731 = vpop.permute.xlu0 %730
      %732 = vrot.lane.b32.xlu0 %v646, 12
      %v733 = vpop.permute.xlu0 %732
      %734 = vrot.lane.b32.xlu0 %v647, 12
      %v735 = vpop.permute.xlu0 %734
      %736 = vrot.lane.b32.xlu0 %v648, 12
      %v737 = vpop.permute.xlu0 %736
      %738 = vrot.lane.b32.xlu0 %v649, 12
      %v739 = vpop.permute.xlu0 %738
      %740 = vrot.lane.b32.xlu0 %v650, 12
      %v741 = vpop.permute.xlu0 %740
      %742 = vrot.lane.b32.xlu0 %v651, 12
      %v743 = vpop.permute.xlu0 %742
      %744 = vrot.lane.b32.xlu0 %v652, 12
      %v745 = vpop.permute.xlu0 %744
      %746 = vrot.lane.b32.xlu0 %v653, 12
      %v747 = vpop.permute.xlu0 %746
      %748 = vrot.lane.b32.xlu0 %v654, 12
      %v749 = vpop.permute.xlu0 %748
      %750 = vrot.lane.b32.xlu0 %v655, 12
      %v751 = vpop.permute.xlu0 %750
      %vm784 = vcmask 130144
      %785 = vst.msk [vmem:[#allocation2] sm:$0xff] %vm784, %v689
      %786 = vst.msk [vmem:[#allocation2 + $0x8] sm:$0xff] %vm784, %v691
      %787 = vst.msk [vmem:[#allocation2 + $0x10] sm:$0xff] %vm784, %v693
      %788 = vst.msk [vmem:[#allocation2 + $0x18] sm:$0xff] %vm784, %v695
      %789 = vst.msk [vmem:[#allocation2 + $0x20] sm:$0xff] %vm784, %v697
      %790 = vst.msk [vmem:[#allocation2 + $0x28] sm:$0xff] %vm784, %v699
      %791 = vst.msk [vmem:[#allocation2 + $0x30] sm:$0xff] %vm784, %v701
      %792 = vst.msk [vmem:[#allocation2 + $0x38] sm:$0xff] %vm784, %v703
      %793 = vst.msk [vmem:[#allocation2 + $0x40] sm:$0xff] %vm784, %v705
      %794 = vst.msk [vmem:[#allocation2 + $0x48] sm:$0xff] %vm784, %v707
      %795 = vst.msk [vmem:[#allocation2 + $0x50] sm:$0xff] %vm784, %v709
      %796 = vst.msk [vmem:[#allocation2 + $0x58] sm:$0xff] %vm784, %v711
      %797 = vst.msk [vmem:[#allocation2 + $0x60] sm:$0xff] %vm784, %v713
      %798 = vst.msk [vmem:[#allocation2 + $0x68] sm:$0xff] %vm784, %v715
      %799 = vst.msk [vmem:[#allocation2 + $0x70] sm:$0xff] %vm784, %v717
      %800 = vst.msk [vmem:[#allocation2 + $0x78] sm:$0xff] %vm784, %v719
      %801 = vst.msk [vmem:[#allocation2 + $0x80] sm:$0xff] %vm784, %v721
      %802 = vst.msk [vmem:[#allocation2 + $0x88] sm:$0xff] %vm784, %v723
      %803 = vst.msk [vmem:[#allocation2 + $0x90] sm:$0xff] %vm784, %v725
      %804 = vst.msk [vmem:[#allocation2 + $0x98] sm:$0xff] %vm784, %v727
      %805 = vst.msk [vmem:[#allocation2 + $0xa0] sm:$0xff] %vm784, %v729
      %806 = vst.msk [vmem:[#allocation2 + $0xa8] sm:$0xff] %vm784, %v731
      %807 = vst.msk [vmem:[#allocation2 + $0xb0] sm:$0xff] %vm784, %v733
      %808 = vst.msk [vmem:[#allocation2 + $0xb8] sm:$0xff] %vm784, %v735
      %809 = vst.msk [vmem:[#allocation2 + $0xc0] sm:$0xff] %vm784, %v737
      %810 = vst.msk [vmem:[#allocation2 + $0xc8] sm:$0xff] %vm784, %v739
      %811 = vst.msk [vmem:[#allocation2 + $0xd0] sm:$0xff] %vm784, %v741
      %812 = vst.msk [vmem:[#allocation2 + $0xd8] sm:$0xff] %vm784, %v743
      %813 = vst.msk [vmem:[#allocation2 + $0xe0] sm:$0xff] %vm784, %v745
      %814 = vst.msk [vmem:[#allocation2 + $0xe8] sm:$0xff] %vm784, %v747
      %815 = vst.msk [vmem:[#allocation2 + $0xf0] sm:$0xff] %vm784, %v749
      %816 = vst.msk [vmem:[#allocation2 + $0xf8] sm:$0xff] %vm784, %v751
      %v817 = vld [vmem:[%s623 + $0x1] sm:$0xff]
      %v818 = vld [vmem:[%s623 + $0x9] sm:$0xff]
      %v819 = vld [vmem:[%s623 + $0x19] sm:$0xff]
      %v820 = vld [vmem:[%s623 + $0x21] sm:$0xff]
      %v821 = vld [vmem:[%s623 + $0x31] sm:$0xff]
      %v822 = vld [vmem:[%s623 + $0x39] sm:$0xff]
      %v823 = vld [vmem:[%s623 + $0x49] sm:$0xff]
      %v824 = vld [vmem:[%s623 + $0x51] sm:$0xff]
      %v825 = vld [vmem:[%s623 + $0x61] sm:$0xff]
      %v826 = vld [vmem:[%s623 + $0x69] sm:$0xff]
      %v827 = vld [vmem:[%s623 + $0x79] sm:$0xff]
      %v828 = vld [vmem:[%s623 + $0x81] sm:$0xff]
      %v829 = vld [vmem:[%s623 + $0x91] sm:$0xff]
      %v830 = vld [vmem:[%s623 + $0x99] sm:$0xff]
      %v831 = vld [vmem:[%s623 + $0xa9] sm:$0xff]
      %v832 = vld [vmem:[%s623 + $0xb1] sm:$0xff]
      %v833 = vld [vmem:[%s623 + $0xc1] sm:$0xff]
      %v834 = vld [vmem:[%s623 + $0xc9] sm:$0xff]
      %v835 = vld [vmem:[%s623 + $0xd9] sm:$0xff]
      %v836 = vld [vmem:[%s623 + $0xe1] sm:$0xff]
      %v837 = vld [vmem:[%s623 + $0xf1] sm:$0xff]
      %v838 = vld [vmem:[%s623 + $0xf9] sm:$0xff]
      %v839 = vld [vmem:[%s623 + $0x109] sm:$0xff]
      %v840 = vld [vmem:[%s623 + $0x111] sm:$0xff]
      %v841 = vld [vmem:[%s623 + $0x121] sm:$0xff]
      %v842 = vld [vmem:[%s623 + $0x129] sm:$0xff]
      %v843 = vld [vmem:[%s623 + $0x139] sm:$0xff]
      %v844 = vld [vmem:[%s623 + $0x141] sm:$0xff]
      %v845 = vld [vmem:[%s623 + $0x151] sm:$0xff]
      %v846 = vld [vmem:[%s623 + $0x159] sm:$0xff]
      %v847 = vld [vmem:[%s623 + $0x169] sm:$0xff]
      %v848 = vld [vmem:[%s623 + $0x171] sm:$0xff]
      %881 = vrot.lane.b32.xlu0 %v817, 16
      %v882 = vpop.permute.xlu0 %881
      %883 = vrot.lane.b32.xlu0 %v818, 16
      %v884 = vpop.permute.xlu0 %883
      %885 = vrot.lane.b32.xlu0 %v819, 16
      %v886 = vpop.permute.xlu0 %885
      %887 = vrot.lane.b32.xlu0 %v820, 16
      %v888 = vpop.permute.xlu0 %887
      %889 = vrot.lane.b32.xlu0 %v821, 16
      %v890 = vpop.permute.xlu0 %889
      %891 = vrot.lane.b32.xlu0 %v822, 16
      %v892 = vpop.permute.xlu0 %891
      %893 = vrot.lane.b32.xlu0 %v823, 16
      %v894 = vpop.permute.xlu0 %893
      %895 = vrot.lane.b32.xlu0 %v824, 16
      %v896 = vpop.permute.xlu0 %895
      %897 = vrot.lane.b32.xlu0 %v825, 16
      %v898 = vpop.permute.xlu0 %897
      %899 = vrot.lane.b32.xlu0 %v826, 16
      %v900 = vpop.permute.xlu0 %899
      %901 = vrot.lane.b32.xlu0 %v827, 16
      %v902 = vpop.permute.xlu0 %901
      %903 = vrot.lane.b32.xlu0 %v828, 16
      %v904 = vpop.permute.xlu0 %903
      %905 = vrot.lane.b32.xlu0 %v829, 16
      %v906 = vpop.permute.xlu0 %905
      %907 = vrot.lane.b32.xlu0 %v830, 16
      %v908 = vpop.permute.xlu0 %907
      %909 = vrot.lane.b32.xlu0 %v831, 16
      %v910 = vpop.permute.xlu0 %909
      %911 = vrot.lane.b32.xlu0 %v832, 16
      %v912 = vpop.permute.xlu0 %911
      %913 = vrot.lane.b32.xlu0 %v833, 16
      %v914 = vpop.permute.xlu0 %913
      %915 = vrot.lane.b32.xlu0 %v834, 16
      %v916 = vpop.permute.xlu0 %915
      %917 = vrot.lane.b32.xlu0 %v835, 16
      %v918 = vpop.permute.xlu0 %917
      %919 = vrot.lane.b32.xlu0 %v836, 16
      %v920 = vpop.permute.xlu0 %919
      %921 = vrot.lane.b32.xlu0 %v837, 16
      %v922 = vpop.permute.xlu0 %921
      %923 = vrot.lane.b32.xlu0 %v838, 16
      %v924 = vpop.permute.xlu0 %923
      %925 = vrot.lane.b32.xlu0 %v839, 16
      %v926 = vpop.permute.xlu0 %925
      %927 = vrot.lane.b32.xlu0 %v840, 16
      %v928 = vpop.permute.xlu0 %927
      %929 = vrot.lane.b32.xlu0 %v841, 16
      %v930 = vpop.permute.xlu0 %929
      %931 = vrot.lane.b32.xlu0 %v842, 16
      %v932 = vpop.permute.xlu0 %931
      %933 = vrot.lane.b32.xlu0 %v843, 16
      %v934 = vpop.permute.xlu0 %933
      %935 = vrot.lane.b32.xlu0 %v844, 16
      %v936 = vpop.permute.xlu0 %935
      %937 = vrot.lane.b32.xlu0 %v845, 16
      %v938 = vpop.permute.xlu0 %937
      %939 = vrot.lane.b32.xlu0 %v846, 16
      %v940 = vpop.permute.xlu0 %939
      %941 = vrot.lane.b32.xlu0 %v847, 16
      %v942 = vpop.permute.xlu0 %941
      %943 = vrot.lane.b32.xlu0 %v848, 16
      %v944 = vpop.permute.xlu0 %943
      %vm977 = vcmask 162944
      %978 = vst.msk [vmem:[#allocation2] sm:$0xff] %vm977, %v882
      %979 = vst.msk [vmem:[#allocation2 + $0x8] sm:$0xff] %vm977, %v884
      %980 = vst.msk [vmem:[#allocation2 + $0x10] sm:$0xff] %vm977, %v886
      %981 = vst.msk [vmem:[#allocation2 + $0x18] sm:$0xff] %vm977, %v888
      %982 = vst.msk [vmem:[#allocation2 + $0x20] sm:$0xff] %vm977, %v890
      %983 = vst.msk [vmem:[#allocation2 + $0x28] sm:$0xff] %vm977, %v892
      %984 = vst.msk [vmem:[#allocation2 + $0x30] sm:$0xff] %vm977, %v894
      %985 = vst.msk [vmem:[#allocation2 + $0x38] sm:$0xff] %vm977, %v896
      %986 = vst.msk [vmem:[#allocation2 + $0x40] sm:$0xff] %vm977, %v898
      %987 = vst.msk [vmem:[#allocation2 + $0x48] sm:$0xff] %vm977, %v900
      %988 = vst.msk [vmem:[#allocation2 + $0x50] sm:$0xff] %vm977, %v902
      %989 = vst.msk [vmem:[#allocation2 + $0x58] sm:$0xff] %vm977, %v904
      %990 = vst.msk [vmem:[#allocation2 + $0x60] sm:$0xff] %vm977, %v906
      %991 = vst.msk [vmem:[#allocation2 + $0x68] sm:$0xff] %vm977, %v908
      %992 = vst.msk [vmem:[#allocation2 + $0x70] sm:$0xff] %vm977, %v910
      %993 = vst.msk [vmem:[#allocation2 + $0x78] sm:$0xff] %vm977, %v912
      %994 = vst.msk [vmem:[#allocation2 + $0x80] sm:$0xff] %vm977, %v914
      %995 = vst.msk [vmem:[#allocation2 + $0x88] sm:$0xff] %vm977, %v916
      %996 = vst.msk [vmem:[#allocation2 + $0x90] sm:$0xff] %vm977, %v918
      %997 = vst.msk [vmem:[#allocation2 + $0x98] sm:$0xff] %vm977, %v920
      %998 = vst.msk [vmem:[#allocation2 + $0xa0] sm:$0xff] %vm977, %v922
      %999 = vst.msk [vmem:[#allocation2 + $0xa8] sm:$0xff] %vm977, %v924
      %1000 = vst.msk [vmem:[#allocation2 + $0xb0] sm:$0xff] %vm977, %v926
      %1001 = vst.msk [vmem:[#allocation2 + $0xb8] sm:$0xff] %vm977, %v928
      %1002 = vst.msk [vmem:[#allocation2 + $0xc0] sm:$0xff] %vm977, %v930
      %1003 = vst.msk [vmem:[#allocation2 + $0xc8] sm:$0xff] %vm977, %v932
      %1004 = vst.msk [vmem:[#allocation2 + $0xd0] sm:$0xff] %vm977, %v934
      %1005 = vst.msk [vmem:[#allocation2 + $0xd8] sm:$0xff] %vm977, %v936
      %1006 = vst.msk [vmem:[#allocation2 + $0xe0] sm:$0xff] %vm977, %v938
      %1007 = vst.msk [vmem:[#allocation2 + $0xe8] sm:$0xff] %vm977, %v940
      %1008 = vst.msk [vmem:[#allocation2 + $0xf0] sm:$0xff] %vm977, %v942
      %1009 = vst.msk [vmem:[#allocation2 + $0xf8] sm:$0xff] %vm977, %v944
      %v1010 = vld [vmem:[%s623 + $0x2] sm:$0xff]
      %v1011 = vld [vmem:[%s623 + $0xa] sm:$0xff]
      %v1012 = vld [vmem:[%s623 + $0x1a] sm:$0xff]
      %v1013 = vld [vmem:[%s623 + $0x22] sm:$0xff]
      %v1014 = vld [vmem:[%s623 + $0x32] sm:$0xff]
      %v1015 = vld [vmem:[%s623 + $0x3a] sm:$0xff]
      %v1016 = vld [vmem:[%s623 + $0x4a] sm:$0xff]
      %v1017 = vld [vmem:[%s623 + $0x52] sm:$0xff]
      %v1018 = vld [vmem:[%s623 + $0x62] sm:$0xff]
      %v1019 = vld [vmem:[%s623 + $0x6a] sm:$0xff]
      %v1020 = vld [vmem:[%s623 + $0x7a] sm:$0xff]
      %v1021 = vld [vmem:[%s623 + $0x82] sm:$0xff]
      %v1022 = vld [vmem:[%s623 + $0x92] sm:$0xff]
      %v1023 = vld [vmem:[%s623 + $0x9a] sm:$0xff]
      %v1024 = vld [vmem:[%s623 + $0xaa] sm:$0xff]
      %v1025 = vld [vmem:[%s623 + $0xb2] sm:$0xff]
      %v1026 = vld [vmem:[%s623 + $0xc2] sm:$0xff]
      %v1027 = vld [vmem:[%s623 + $0xca] sm:$0xff]
      %v1028 = vld [vmem:[%s623 + $0xda] sm:$0xff]
      %v1029 = vld [vmem:[%s623 + $0xe2] sm:$0xff]
      %v1030 = vld [vmem:[%s623 + $0xf2] sm:$0xff]
      %v1031 = vld [vmem:[%s623 + $0xfa] sm:$0xff]
      %v1032 = vld [vmem:[%s623 + $0x10a] sm:$0xff]
      %v1033 = vld [vmem:[%s623 + $0x112] sm:$0xff]
      %v1034 = vld [vmem:[%s623 + $0x122] sm:$0xff]
      %v1035 = vld [vmem:[%s623 + $0x12a] sm:$0xff]
      %v1036 = vld [vmem:[%s623 + $0x13a] sm:$0xff]
      %v1037 = vld [vmem:[%s623 + $0x142] sm:$0xff]
      %v1038 = vld [vmem:[%s623 + $0x152] sm:$0xff]
      %v1039 = vld [vmem:[%s623 + $0x15a] sm:$0xff]
      %v1040 = vld [vmem:[%s623 + $0x16a] sm:$0xff]
      %v1041 = vld [vmem:[%s623 + $0x172] sm:$0xff]
      %1074 = vrot.lane.b32.xlu0 %v1010, 20
      %v1075 = vpop.permute.xlu0 %1074
      %1076 = vrot.lane.b32.xlu0 %v1011, 20
      %v1077 = vpop.permute.xlu0 %1076
      %1078 = vrot.lane.b32.xlu0 %v1012, 20
      %v1079 = vpop.permute.xlu0 %1078
      %1080 = vrot.lane.b32.xlu0 %v1013, 20
      %v1081 = vpop.permute.xlu0 %1080
      %1082 = vrot.lane.b32.xlu0 %v1014, 20
      %v1083 = vpop.permute.xlu0 %1082
      %1084 = vrot.lane.b32.xlu0 %v1015, 20
      %v1085 = vpop.permute.xlu0 %1084
      %1086 = vrot.lane.b32.xlu0 %v1016, 20
      %v1087 = vpop.permute.xlu0 %1086
      %1088 = vrot.lane.b32.xlu0 %v1017, 20
      %v1089 = vpop.permute.xlu0 %1088
      %1090 = vrot.lane.b32.xlu0 %v1018, 20
      %v1091 = vpop.permute.xlu0 %1090
      %1092 = vrot.lane.b32.xlu0 %v1019, 20
      %v1093 = vpop.permute.xlu0 %1092
      %1094 = vrot.lane.b32.xlu0 %v1020, 20
      %v1095 = vpop.permute.xlu0 %1094
      %1096 = vrot.lane.b32.xlu0 %v1021, 20
      %v1097 = vpop.permute.xlu0 %1096
      %1098 = vrot.lane.b32.xlu0 %v1022, 20
      %v1099 = vpop.permute.xlu0 %1098
      %1100 = vrot.lane.b32.xlu0 %v1023, 20
      %v1101 = vpop.permute.xlu0 %1100
      %1102 = vrot.lane.b32.xlu0 %v1024, 20
      %v1103 = vpop.permute.xlu0 %1102
      %1104 = vrot.lane.b32.xlu0 %v1025, 20
      %v1105 = vpop.permute.xlu0 %1104
      %1106 = vrot.lane.b32.xlu0 %v1026, 20
      %v1107 = vpop.permute.xlu0 %1106
      %1108 = vrot.lane.b32.xlu0 %v1027, 20
      %v1109 = vpop.permute.xlu0 %1108
      %1110 = vrot.lane.b32.xlu0 %v1028, 20
      %v1111 = vpop.permute.xlu0 %1110
      %1112 = vrot.lane.b32.xlu0 %v1029, 20
      %v1113 = vpop.permute.xlu0 %1112
      %1114 = vrot.lane.b32.xlu0 %v1030, 20
      %v1115 = vpop.permute.xlu0 %1114
      %1116 = vrot.lane.b32.xlu0 %v1031, 20
      %v1117 = vpop.permute.xlu0 %1116
      %1118 = vrot.lane.b32.xlu0 %v1032, 20
      %v1119 = vpop.permute.xlu0 %1118
      %1120 = vrot.lane.b32.xlu0 %v1033, 20
      %v1121 = vpop.permute.xlu0 %1120
      %1122 = vrot.lane.b32.xlu0 %v1034, 20
      %v1123 = vpop.permute.xlu0 %1122
      %1124 = vrot.lane.b32.xlu0 %v1035, 20
      %v1125 = vpop.permute.xlu0 %1124
      %1126 = vrot.lane.b32.xlu0 %v1036, 20
      %v1127 = vpop.permute.xlu0 %1126
      %1128 = vrot.lane.b32.xlu0 %v1037, 20
      %v1129 = vpop.permute.xlu0 %1128
      %1130 = vrot.lane.b32.xlu0 %v1038, 20
      %v1131 = vpop.permute.xlu0 %1130
      %1132 = vrot.lane.b32.xlu0 %v1039, 20
      %v1133 = vpop.permute.xlu0 %1132
      %1134 = vrot.lane.b32.xlu0 %v1040, 20
      %v1135 = vpop.permute.xlu0 %1134
      %1136 = vrot.lane.b32.xlu0 %v1041, 20
      %v1137 = vpop.permute.xlu0 %1136
      %vm1170 = vcmask 195744
      %1171 = vst.msk [vmem:[#allocation2] sm:$0xff] %vm1170, %v1075
      %1172 = vst.msk [vmem:[#allocation2 + $0x8] sm:$0xff] %vm1170, %v1077
      %1173 = vst.msk [vmem:[#allocation2 + $0x10] sm:$0xff] %vm1170, %v1079
      %1174 = vst.msk [vmem:[#allocation2 + $0x18] sm:$0xff] %vm1170, %v1081
      %1175 = vst.msk [vmem:[#allocation2 + $0x20] sm:$0xff] %vm1170, %v1083
      %1176 = vst.msk [vmem:[#allocation2 + $0x28] sm:$0xff] %vm1170, %v1085
      %1177 = vst.msk [vmem:[#allocation2 + $0x30] sm:$0xff] %vm1170, %v1087
      %1178 = vst.msk [vmem:[#allocation2 + $0x38] sm:$0xff] %vm1170, %v1089
      %1179 = vst.msk [vmem:[#allocation2 + $0x40] sm:$0xff] %vm1170, %v1091
      %1180 = vst.msk [vmem:[#allocation2 + $0x48] sm:$0xff] %vm1170, %v1093
      %1181 = vst.msk [vmem:[#allocation2 + $0x50] sm:$0xff] %vm1170, %v1095
      %1182 = vst.msk [vmem:[#allocation2 + $0x58] sm:$0xff] %vm1170, %v1097
      %1183 = vst.msk [vmem:[#allocation2 + $0x60] sm:$0xff] %vm1170, %v1099
      %1184 = vst.msk [vmem:[#allocation2 + $0x68] sm:$0xff] %vm1170, %v1101
      %1185 = vst.msk [vmem:[#allocation2 + $0x70] sm:$0xff] %vm1170, %v1103
      %1186 = vst.msk [vmem:[#allocation2 + $0x78] sm:$0xff] %vm1170, %v1105
      %1187 = vst.msk [vmem:[#allocation2 + $0x80] sm:$0xff] %vm1170, %v1107
      %1188 = vst.msk [vmem:[#allocation2 + $0x88] sm:$0xff] %vm1170, %v1109
      %1189 = vst.msk [vmem:[#allocation2 + $0x90] sm:$0xff] %vm1170, %v1111
      %1190 = vst.msk [vmem:[#allocation2 + $0x98] sm:$0xff] %vm1170, %v1113
      %1191 = vst.msk [vmem:[#allocation2 + $0xa0] sm:$0xff] %vm1170, %v1115
      %1192 = vst.msk [vmem:[#allocation2 + $0xa8] sm:$0xff] %vm1170, %v1117
      %1193 = vst.msk [vmem:[#allocation2 + $0xb0] sm:$0xff] %vm1170, %v1119
      %1194 = vst.msk [vmem:[#allocation2 + $0xb8] sm:$0xff] %vm1170, %v1121
      %1195 = vst.msk [vmem:[#allocation2 + $0xc0] sm:$0xff] %vm1170, %v1123
      %1196 = vst.msk [vmem:[#allocation2 + $0xc8] sm:$0xff] %vm1170, %v1125
      %1197 = vst.msk [vmem:[#allocation2 + $0xd0] sm:$0xff] %vm1170, %v1127
      %1198 = vst.msk [vmem:[#allocation2 + $0xd8] sm:$0xff] %vm1170, %v1129
      %1199 = vst.msk [vmem:[#allocation2 + $0xe0] sm:$0xff] %vm1170, %v1131
      %1200 = vst.msk [vmem:[#allocation2 + $0xe8] sm:$0xff] %vm1170, %v1133
      %1201 = vst.msk [vmem:[#allocation2 + $0xf0] sm:$0xff] %vm1170, %v1135
      %1202 = vst.msk [vmem:[#allocation2 + $0xf8] sm:$0xff] %vm1170, %v1137
      %s1203 = scalar_lea.vmem %s165, 48
      %v1204 = vld [vmem:[%s1203] sm:$0xff]
      %v1205 = vld [vmem:[%s1203 + $0x8] sm:$0xff]
      %v1206 = vld [vmem:[%s1203 + $0x18] sm:$0xff]
      %v1207 = vld [vmem:[%s1203 + $0x20] sm:$0xff]
      %v1208 = vld [vmem:[%s1203 + $0x30] sm:$0xff]
      %v1209 = vld [vmem:[%s1203 + $0x38] sm:$0xff]
      %v1210 = vld [vmem:[%s1203 + $0x48] sm:$0xff]
      %v1211 = vld [vmem:[%s1203 + $0x50] sm:$0xff]
      %v1212 = vld [vmem:[%s1203 + $0x60] sm:$0xff]
      %v1213 = vld [vmem:[%s1203 + $0x68] sm:$0xff]
      %v1214 = vld [vmem:[%s1203 + $0x78] sm:$0xff]
      %v1215 = vld [vmem:[%s1203 + $0x80] sm:$0xff]
      %v1216 = vld [vmem:[%s1203 + $0x90] sm:$0xff]
      %v1217 = vld [vmem:[%s1203 + $0x98] sm:$0xff]
      %v1218 = vld [vmem:[%s1203 + $0xa8] sm:$0xff]
      %v1219 = vld [vmem:[%s1203 + $0xb0] sm:$0xff]
      %v1220 = vld [vmem:[%s1203 + $0xc0] sm:$0xff]
      %v1221 = vld [vmem:[%s1203 + $0xc8] sm:$0xff]
      %v1222 = vld [vmem:[%s1203 + $0xd8] sm:$0xff]
      %v1223 = vld [vmem:[%s1203 + $0xe0] sm:$0xff]
      %v1224 = vld [vmem:[%s1203 + $0xf0] sm:$0xff]
      %v1225 = vld [vmem:[%s1203 + $0xf8] sm:$0xff]
      %v1226 = vld [vmem:[%s1203 + $0x108] sm:$0xff]
      %v1227 = vld [vmem:[%s1203 + $0x110] sm:$0xff]
      %v1228 = vld [vmem:[%s1203 + $0x120] sm:$0xff]
      %v1229 = vld [vmem:[%s1203 + $0x128] sm:$0xff]
      %v1230 = vld [vmem:[%s1203 + $0x138] sm:$0xff]
      %v1231 = vld [vmem:[%s1203 + $0x140] sm:$0xff]
      %v1232 = vld [vmem:[%s1203 + $0x150] sm:$0xff]
      %v1233 = vld [vmem:[%s1203 + $0x158] sm:$0xff]
      %v1234 = vld [vmem:[%s1203 + $0x168] sm:$0xff]
      %v1235 = vld [vmem:[%s1203 + $0x170] sm:$0xff]
      %1268 = vrot.lane.b32.xlu0 %v1204, 24
      %v1269 = vpop.permute.xlu0 %1268
      %1270 = vrot.lane.b32.xlu0 %v1205, 24
      %v1271 = vpop.permute.xlu0 %1270
      %1272 = vrot.lane.b32.xlu0 %v1206, 24
      %v1273 = vpop.permute.xlu0 %1272
      %1274 = vrot.lane.b32.xlu0 %v1207, 24
      %v1275 = vpop.permute.xlu0 %1274
      %1276 = vrot.lane.b32.xlu0 %v1208, 24
      %v1277 = vpop.permute.xlu0 %1276
      %1278 = vrot.lane.b32.xlu0 %v1209, 24
      %v1279 = vpop.permute.xlu0 %1278
      %1280 = vrot.lane.b32.xlu0 %v1210, 24
      %v1281 = vpop.permute.xlu0 %1280
      %1282 = vrot.lane.b32.xlu0 %v1211, 24
      %v1283 = vpop.permute.xlu0 %1282
      %1284 = vrot.lane.b32.xlu0 %v1212, 24
      %v1285 = vpop.permute.xlu0 %1284
      %1286 = vrot.lane.b32.xlu0 %v1213, 24
      %v1287 = vpop.permute.xlu0 %1286
      %1288 = vrot.lane.b32.xlu0 %v1214, 24
      %v1289 = vpop.permute.xlu0 %1288
      %1290 = vrot.lane.b32.xlu0 %v1215, 24
      %v1291 = vpop.permute.xlu0 %1290
      %1292 = vrot.lane.b32.xlu0 %v1216, 24
      %v1293 = vpop.permute.xlu0 %1292
      %1294 = vrot.lane.b32.xlu0 %v1217, 24
      %v1295 = vpop.permute.xlu0 %1294
      %1296 = vrot.lane.b32.xlu0 %v1218, 24
      %v1297 = vpop.permute.xlu0 %1296
      %1298 = vrot.lane.b32.xlu0 %v1219, 24
      %v1299 = vpop.permute.xlu0 %1298
      %1300 = vrot.lane.b32.xlu0 %v1220, 24
      %v1301 = vpop.permute.xlu0 %1300
      %1302 = vrot.lane.b32.xlu0 %v1221, 24
      %v1303 = vpop.permute.xlu0 %1302
      %1304 = vrot.lane.b32.xlu0 %v1222, 24
      %v1305 = vpop.permute.xlu0 %1304
      %1306 = vrot.lane.b32.xlu0 %v1223, 24
      %v1307 = vpop.permute.xlu0 %1306
      %1308 = vrot.lane.b32.xlu0 %v1224, 24
      %v1309 = vpop.permute.xlu0 %1308
      %1310 = vrot.lane.b32.xlu0 %v1225, 24
      %v1311 = vpop.permute.xlu0 %1310
      %1312 = vrot.lane.b32.xlu0 %v1226, 24
      %v1313 = vpop.permute.xlu0 %1312
      %1314 = vrot.lane.b32.xlu0 %v1227, 24
      %v1315 = vpop.permute.xlu0 %1314
      %1316 = vrot.lane.b32.xlu0 %v1228, 24
      %v1317 = vpop.permute.xlu0 %1316
      %1318 = vrot.lane.b32.xlu0 %v1229, 24
      %v1319 = vpop.permute.xlu0 %1318
      %1320 = vrot.lane.b32.xlu0 %v1230, 24
      %v1321 = vpop.permute.xlu0 %1320
      %1322 = vrot.lane.b32.xlu0 %v1231, 24
      %v1323 = vpop.permute.xlu0 %1322
      %1324 = vrot.lane.b32.xlu0 %v1232, 24
      %v1325 = vpop.permute.xlu0 %1324
      %1326 = vrot.lane.b32.xlu0 %v1233, 24
      %v1327 = vpop.permute.xlu0 %1326
      %1328 = vrot.lane.b32.xlu0 %v1234, 24
      %v1329 = vpop.permute.xlu0 %1328
      %1330 = vrot.lane.b32.xlu0 %v1235, 24
      %v1331 = vpop.permute.xlu0 %1330
      %vm1364 = vcmask 228544
      %1365 = vst.msk [vmem:[#allocation2] sm:$0xff] %vm1364, %v1269
      %1366 = vst.msk [vmem:[#allocation2 + $0x8] sm:$0xff] %vm1364, %v1271
      %1367 = vst.msk [vmem:[#allocation2 + $0x10] sm:$0xff] %vm1364, %v1273
      %1368 = vst.msk [vmem:[#allocation2 + $0x18] sm:$0xff] %vm1364, %v1275
      %1369 = vst.msk [vmem:[#allocation2 + $0x20] sm:$0xff] %vm1364, %v1277
      %1370 = vst.msk [vmem:[#allocation2 + $0x28] sm:$0xff] %vm1364, %v1279
      %1371 = vst.msk [vmem:[#allocation2 + $0x30] sm:$0xff] %vm1364, %v1281
      %1372 = vst.msk [vmem:[#allocation2 + $0x38] sm:$0xff] %vm1364, %v1283
      %1373 = vst.msk [vmem:[#allocation2 + $0x40] sm:$0xff] %vm1364, %v1285
      %1374 = vst.msk [vmem:[#allocation2 + $0x48] sm:$0xff] %vm1364, %v1287
      %1375 = vst.msk [vmem:[#allocation2 + $0x50] sm:$0xff] %vm1364, %v1289
      %1376 = vst.msk [vmem:[#allocation2 + $0x58] sm:$0xff] %vm1364, %v1291
      %1377 = vst.msk [vmem:[#allocation2 + $0x60] sm:$0xff] %vm1364, %v1293
      %1378 = vst.msk [vmem:[#allocation2 + $0x68] sm:$0xff] %vm1364, %v1295
      %1379 = vst.msk [vmem:[#allocation2 + $0x70] sm:$0xff] %vm1364, %v1297
      %1380 = vst.msk [vmem:[#allocation2 + $0x78] sm:$0xff] %vm1364, %v1299
      %1381 = vst.msk [vmem:[#allocation2 + $0x80] sm:$0xff] %vm1364, %v1301
      %1382 = vst.msk [vmem:[#allocation2 + $0x88] sm:$0xff] %vm1364, %v1303
      %1383 = vst.msk [vmem:[#allocation2 + $0x90] sm:$0xff] %vm1364, %v1305
      %1384 = vst.msk [vmem:[#allocation2 + $0x98] sm:$0xff] %vm1364, %v1307
      %1385 = vst.msk [vmem:[#allocation2 + $0xa0] sm:$0xff] %vm1364, %v1309
      %1386 = vst.msk [vmem:[#allocation2 + $0xa8] sm:$0xff] %vm1364, %v1311
      %1387 = vst.msk [vmem:[#allocation2 + $0xb0] sm:$0xff] %vm1364, %v1313
      %1388 = vst.msk [vmem:[#allocation2 + $0xb8] sm:$0xff] %vm1364, %v1315
      %1389 = vst.msk [vmem:[#allocation2 + $0xc0] sm:$0xff] %vm1364, %v1317
      %1390 = vst.msk [vmem:[#allocation2 + $0xc8] sm:$0xff] %vm1364, %v1319
      %1391 = vst.msk [vmem:[#allocation2 + $0xd0] sm:$0xff] %vm1364, %v1321
      %1392 = vst.msk [vmem:[#allocation2 + $0xd8] sm:$0xff] %vm1364, %v1323
      %1393 = vst.msk [vmem:[#allocation2 + $0xe0] sm:$0xff] %vm1364, %v1325
      %1394 = vst.msk [vmem:[#allocation2 + $0xe8] sm:$0xff] %vm1364, %v1327
      %1395 = vst.msk [vmem:[#allocation2 + $0xf0] sm:$0xff] %vm1364, %v1329
      %1396 = vst.msk [vmem:[#allocation2 + $0xf8] sm:$0xff] %vm1364, %v1331
      %v1397 = vld [vmem:[%s1203 + $0x1] sm:$0xff]
      %v1398 = vld [vmem:[%s1203 + $0x9] sm:$0xff]
      %v1399 = vld [vmem:[%s1203 + $0x19] sm:$0xff]
      %v1400 = vld [vmem:[%s1203 + $0x21] sm:$0xff]
      %v1401 = vld [vmem:[%s1203 + $0x31] sm:$0xff]
      %v1402 = vld [vmem:[%s1203 + $0x39] sm:$0xff]
      %v1403 = vld [vmem:[%s1203 + $0x49] sm:$0xff]
      %v1404 = vld [vmem:[%s1203 + $0x51] sm:$0xff]
      %v1405 = vld [vmem:[%s1203 + $0x61] sm:$0xff]
      %v1406 = vld [vmem:[%s1203 + $0x69] sm:$0xff]
      %v1407 = vld [vmem:[%s1203 + $0x79] sm:$0xff]
      %v1408 = vld [vmem:[%s1203 + $0x81] sm:$0xff]
      %v1409 = vld [vmem:[%s1203 + $0x91] sm:$0xff]
      %v1410 = vld [vmem:[%s1203 + $0x99] sm:$0xff]
      %v1411 = vld [vmem:[%s1203 + $0xa9] sm:$0xff]
      %v1412 = vld [vmem:[%s1203 + $0xb1] sm:$0xff]
      %v1413 = vld [vmem:[%s1203 + $0xc1] sm:$0xff]
      %v1414 = vld [vmem:[%s1203 + $0xc9] sm:$0xff]
      %v1415 = vld [vmem:[%s1203 + $0xd9] sm:$0xff]
      %v1416 = vld [vmem:[%s1203 + $0xe1] sm:$0xff]
      %v1417 = vld [vmem:[%s1203 + $0xf1] sm:$0xff]
      %v1418 = vld [vmem:[%s1203 + $0xf9] sm:$0xff]
      %v1419 = vld [vmem:[%s1203 + $0x109] sm:$0xff]
      %v1420 = vld [vmem:[%s1203 + $0x111] sm:$0xff]
      %v1421 = vld [vmem:[%s1203 + $0x121] sm:$0xff]
      %v1422 = vld [vmem:[%s1203 + $0x129] sm:$0xff]
      %v1423 = vld [vmem:[%s1203 + $0x139] sm:$0xff]
      %v1424 = vld [vmem:[%s1203 + $0x141] sm:$0xff]
      %v1425 = vld [vmem:[%s1203 + $0x151] sm:$0xff]
      %v1426 = vld [vmem:[%s1203 + $0x159] sm:$0xff]
      %v1427 = vld [vmem:[%s1203 + $0x169] sm:$0xff]
      %v1428 = vld [vmem:[%s1203 + $0x171] sm:$0xff]
      %1461 = vrot.lane.b32.xlu0 %v1397, 28
      %v1462 = vpop.permute.xlu0 %1461
      %1463 = vrot.lane.b32.xlu0 %v1398, 28
      %v1464 = vpop.permute.xlu0 %1463
      %1465 = vrot.lane.b32.xlu0 %v1399, 28
      %v1466 = vpop.permute.xlu0 %1465
      %1467 = vrot.lane.b32.xlu0 %v1400, 28
      %v1468 = vpop.permute.xlu0 %1467
      %1469 = vrot.lane.b32.xlu0 %v1401, 28
      %v1470 = vpop.permute.xlu0 %1469
      %1471 = vrot.lane.b32.xlu0 %v1402, 28
      %v1472 = vpop.permute.xlu0 %1471
      %1473 = vrot.lane.b32.xlu0 %v1403, 28
      %v1474 = vpop.permute.xlu0 %1473
      %1475 = vrot.lane.b32.xlu0 %v1404, 28
      %v1476 = vpop.permute.xlu0 %1475
      %1477 = vrot.lane.b32.xlu0 %v1405, 28
      %v1478 = vpop.permute.xlu0 %1477
      %1479 = vrot.lane.b32.xlu0 %v1406, 28
      %v1480 = vpop.permute.xlu0 %1479
      %1481 = vrot.lane.b32.xlu0 %v1407, 28
      %v1482 = vpop.permute.xlu0 %1481
      %1483 = vrot.lane.b32.xlu0 %v1408, 28
      %v1484 = vpop.permute.xlu0 %1483
      %1485 = vrot.lane.b32.xlu0 %v1409, 28
      %v1486 = vpop.permute.xlu0 %1485
      %1487 = vrot.lane.b32.xlu0 %v1410, 28
      %v1488 = vpop.permute.xlu0 %1487
      %1489 = vrot.lane.b32.xlu0 %v1411, 28
      %v1490 = vpop.permute.xlu0 %1489
      %1491 = vrot.lane.b32.xlu0 %v1412, 28
      %v1492 = vpop.permute.xlu0 %1491
      %1493 = vrot.lane.b32.xlu0 %v1413, 28
      %v1494 = vpop.permute.xlu0 %1493
      %1495 = vrot.lane.b32.xlu0 %v1414, 28
      %v1496 = vpop.permute.xlu0 %1495
      %1497 = vrot.lane.b32.xlu0 %v1415, 28
      %v1498 = vpop.permute.xlu0 %1497
      %1499 = vrot.lane.b32.xlu0 %v1416, 28
      %v1500 = vpop.permute.xlu0 %1499
      %1501 = vrot.lane.b32.xlu0 %v1417, 28
      %v1502 = vpop.permute.xlu0 %1501
      %1503 = vrot.lane.b32.xlu0 %v1418, 28
      %v1504 = vpop.permute.xlu0 %1503
      %1505 = vrot.lane.b32.xlu0 %v1419, 28
      %v1506 = vpop.permute.xlu0 %1505
      %1507 = vrot.lane.b32.xlu0 %v1420, 28
      %v1508 = vpop.permute.xlu0 %1507
      %1509 = vrot.lane.b32.xlu0 %v1421, 28
      %v1510 = vpop.permute.xlu0 %1509
      %1511 = vrot.lane.b32.xlu0 %v1422, 28
      %v1512 = vpop.permute.xlu0 %1511
      %1513 = vrot.lane.b32.xlu0 %v1423, 28
      %v1514 = vpop.permute.xlu0 %1513
      %1515 = vrot.lane.b32.xlu0 %v1424, 28
      %v1516 = vpop.permute.xlu0 %1515
      %1517 = vrot.lane.b32.xlu0 %v1425, 28
      %v1518 = vpop.permute.xlu0 %1517
      %1519 = vrot.lane.b32.xlu0 %v1426, 28
      %v1520 = vpop.permute.xlu0 %1519
      %1521 = vrot.lane.b32.xlu0 %v1427, 28
      %v1522 = vpop.permute.xlu0 %1521
      %1523 = vrot.lane.b32.xlu0 %v1428, 28
      %v1524 = vpop.permute.xlu0 %1523
      %vm1557 = vcmask 261344
      %1558 = vst.msk [vmem:[#allocation2] sm:$0xff] %vm1557, %v1462
      %1559 = vst.msk [vmem:[#allocation2 + $0x8] sm:$0xff] %vm1557, %v1464
      %1560 = vst.msk [vmem:[#allocation2 + $0x10] sm:$0xff] %vm1557, %v1466
      %1561 = vst.msk [vmem:[#allocation2 + $0x18] sm:$0xff] %vm1557, %v1468
      %1562 = vst.msk [vmem:[#allocation2 + $0x20] sm:$0xff] %vm1557, %v1470
      %1563 = vst.msk [vmem:[#allocation2 + $0x28] sm:$0xff] %vm1557, %v1472
      %1564 = vst.msk [vmem:[#allocation2 + $0x30] sm:$0xff] %vm1557, %v1474
      %1565 = vst.msk [vmem:[#allocation2 + $0x38] sm:$0xff] %vm1557, %v1476
      %1566 = vst.msk [vmem:[#allocation2 + $0x40] sm:$0xff] %vm1557, %v1478
      %1567 = vst.msk [vmem:[#allocation2 + $0x48] sm:$0xff] %vm1557, %v1480
      %1568 = vst.msk [vmem:[#allocation2 + $0x50] sm:$0xff] %vm1557, %v1482
      %1569 = vst.msk [vmem:[#allocation2 + $0x58] sm:$0xff] %vm1557, %v1484
      %1570 = vst.msk [vmem:[#allocation2 + $0x60] sm:$0xff] %vm1557, %v1486
      %1571 = vst.msk [vmem:[#allocation2 + $0x68] sm:$0xff] %vm1557, %v1488
      %1572 = vst.msk [vmem:[#allocation2 + $0x70] sm:$0xff] %vm1557, %v1490
      %1573 = vst.msk [vmem:[#allocation2 + $0x78] sm:$0xff] %vm1557, %v1492
      %1574 = vst.msk [vmem:[#allocation2 + $0x80] sm:$0xff] %vm1557, %v1494
      %1575 = vst.msk [vmem:[#allocation2 + $0x88] sm:$0xff] %vm1557, %v1496
      %1576 = vst.msk [vmem:[#allocation2 + $0x90] sm:$0xff] %vm1557, %v1498
      %1577 = vst.msk [vmem:[#allocation2 + $0x98] sm:$0xff] %vm1557, %v1500
      %1578 = vst.msk [vmem:[#allocation2 + $0xa0] sm:$0xff] %vm1557, %v1502
      %1579 = vst.msk [vmem:[#allocation2 + $0xa8] sm:$0xff] %vm1557, %v1504
      %1580 = vst.msk [vmem:[#allocation2 + $0xb0] sm:$0xff] %vm1557, %v1506
      %1581 = vst.msk [vmem:[#allocation2 + $0xb8] sm:$0xff] %vm1557, %v1508
      %1582 = vst.msk [vmem:[#allocation2 + $0xc0] sm:$0xff] %vm1557, %v1510
      %1583 = vst.msk [vmem:[#allocation2 + $0xc8] sm:$0xff] %vm1557, %v1512
      %1584 = vst.msk [vmem:[#allocation2 + $0xd0] sm:$0xff] %vm1557, %v1514
      %1585 = vst.msk [vmem:[#allocation2 + $0xd8] sm:$0xff] %vm1557, %v1516
      %1586 = vst.msk [vmem:[#allocation2 + $0xe0] sm:$0xff] %vm1557, %v1518
      %1587 = vst.msk [vmem:[#allocation2 + $0xe8] sm:$0xff] %vm1557, %v1520
      %1588 = vst.msk [vmem:[#allocation2 + $0xf0] sm:$0xff] %vm1557, %v1522
      %1589 = vst.msk [vmem:[#allocation2 + $0xf8] sm:$0xff] %vm1557, %v1524
      %v1590 = vld [vmem:[%s1203 + $0x2] sm:$0xff]
      %v1591 = vld [vmem:[%s1203 + $0xa] sm:$0xff]
      %v1592 = vld [vmem:[%s1203 + $0x1a] sm:$0xff]
      %v1593 = vld [vmem:[%s1203 + $0x22] sm:$0xff]
      %v1594 = vld [vmem:[%s1203 + $0x32] sm:$0xff]
      %v1595 = vld [vmem:[%s1203 + $0x3a] sm:$0xff]
      %v1596 = vld [vmem:[%s1203 + $0x4a] sm:$0xff]
      %v1597 = vld [vmem:[%s1203 + $0x52] sm:$0xff]
      %v1598 = vld [vmem:[%s1203 + $0x62] sm:$0xff]
      %v1599 = vld [vmem:[%s1203 + $0x6a] sm:$0xff]
      %v1600 = vld [vmem:[%s1203 + $0x7a] sm:$0xff]
      %v1601 = vld [vmem:[%s1203 + $0x82] sm:$0xff]
      %v1602 = vld [vmem:[%s1203 + $0x92] sm:$0xff]
      %v1603 = vld [vmem:[%s1203 + $0x9a] sm:$0xff]
      %v1604 = vld [vmem:[%s1203 + $0xaa] sm:$0xff]
      %v1605 = vld [vmem:[%s1203 + $0xb2] sm:$0xff]
      %v1606 = vld [vmem:[%s1203 + $0xc2] sm:$0xff]
      %v1607 = vld [vmem:[%s1203 + $0xca] sm:$0xff]
      %v1608 = vld [vmem:[%s1203 + $0xda] sm:$0xff]
      %v1609 = vld [vmem:[%s1203 + $0xe2] sm:$0xff]
      %v1610 = vld [vmem:[%s1203 + $0xf2] sm:$0xff]
      %v1611 = vld [vmem:[%s1203 + $0xfa] sm:$0xff]
      %v1612 = vld [vmem:[%s1203 + $0x10a] sm:$0xff]
      %v1613 = vld [vmem:[%s1203 + $0x112] sm:$0xff]
      %v1614 = vld [vmem:[%s1203 + $0x122] sm:$0xff]
      %v1615 = vld [vmem:[%s1203 + $0x12a] sm:$0xff]
      %v1616 = vld [vmem:[%s1203 + $0x13a] sm:$0xff]
      %v1617 = vld [vmem:[%s1203 + $0x142] sm:$0xff]
      %v1618 = vld [vmem:[%s1203 + $0x152] sm:$0xff]
      %v1619 = vld [vmem:[%s1203 + $0x15a] sm:$0xff]
      %v1620 = vld [vmem:[%s1203 + $0x16a] sm:$0xff]
      %v1621 = vld [vmem:[%s1203 + $0x172] sm:$0xff]
      %1654 = vrot.lane.b32.xlu0 %v1590, 32
      %v1655 = vpop.permute.xlu0 %1654
      %1656 = vrot.lane.b32.xlu0 %v1591, 32
      %v1657 = vpop.permute.xlu0 %1656
      %1658 = vrot.lane.b32.xlu0 %v1592, 32
      %v1659 = vpop.permute.xlu0 %1658
      %1660 = vrot.lane.b32.xlu0 %v1593, 32
      %v1661 = vpop.permute.xlu0 %1660
      %1662 = vrot.lane.b32.xlu0 %v1594, 32
      %v1663 = vpop.permute.xlu0 %1662
      %1664 = vrot.lane.b32.xlu0 %v1595, 32
      %v1665 = vpop.permute.xlu0 %1664
      %1666 = vrot.lane.b32.xlu0 %v1596, 32
      %v1667 = vpop.permute.xlu0 %1666
      %1668 = vrot.lane.b32.xlu0 %v1597, 32
      %v1669 = vpop.permute.xlu0 %1668
      %1670 = vrot.lane.b32.xlu0 %v1598, 32
      %v1671 = vpop.permute.xlu0 %1670
      %1672 = vrot.lane.b32.xlu0 %v1599, 32
      %v1673 = vpop.permute.xlu0 %1672
      %1674 = vrot.lane.b32.xlu0 %v1600, 32
      %v1675 = vpop.permute.xlu0 %1674
      %1676 = vrot.lane.b32.xlu0 %v1601, 32
      %v1677 = vpop.permute.xlu0 %1676
      %1678 = vrot.lane.b32.xlu0 %v1602, 32
      %v1679 = vpop.permute.xlu0 %1678
      %1680 = vrot.lane.b32.xlu0 %v1603, 32
      %v1681 = vpop.permute.xlu0 %1680
      %1682 = vrot.lane.b32.xlu0 %v1604, 32
      %v1683 = vpop.permute.xlu0 %1682
      %1684 = vrot.lane.b32.xlu0 %v1605, 32
      %v1685 = vpop.permute.xlu0 %1684
      %1686 = vrot.lane.b32.xlu0 %v1606, 32
      %v1687 = vpop.permute.xlu0 %1686
      %1688 = vrot.lane.b32.xlu0 %v1607, 32
      %v1689 = vpop.permute.xlu0 %1688
      %1690 = vrot.lane.b32.xlu0 %v1608, 32
      %v1691 = vpop.permute.xlu0 %1690
      %1692 = vrot.lane.b32.xlu0 %v1609, 32
      %v1693 = vpop.permute.xlu0 %1692
      %1694 = vrot.lane.b32.xlu0 %v1610, 32
      %v1695 = vpop.permute.xlu0 %1694
      %1696 = vrot.lane.b32.xlu0 %v1611, 32
      %v1697 = vpop.permute.xlu0 %1696
      %1698 = vrot.lane.b32.xlu0 %v1612, 32
      %v1699 = vpop.permute.xlu0 %1698
      %1700 = vrot.lane.b32.xlu0 %v1613, 32
      %v1701 = vpop.permute.xlu0 %1700
      %1702 = vrot.lane.b32.xlu0 %v1614, 32
      %v1703 = vpop.permute.xlu0 %1702
      %1704 = vrot.lane.b32.xlu0 %v1615, 32
      %v1705 = vpop.permute.xlu0 %1704
      %1706 = vrot.lane.b32.xlu0 %v1616, 32
      %v1707 = vpop.permute.xlu0 %1706
      %1708 = vrot.lane.b32.xlu0 %v1617, 32
      %v1709 = vpop.permute.xlu0 %1708
      %1710 = vrot.lane.b32.xlu0 %v1618, 32
      %v1711 = vpop.permute.xlu0 %1710
      %1712 = vrot.lane.b32.xlu0 %v1619, 32
      %v1713 = vpop.permute.xlu0 %1712
      %1714 = vrot.lane.b32.xlu0 %v1620, 32
      %v1715 = vpop.permute.xlu0 %1714
      %1716 = vrot.lane.b32.xlu0 %v1621, 32
      %v1717 = vpop.permute.xlu0 %1716
      %vm1750 = vcmask 294144
      %1751 = vst.msk [vmem:[#allocation2] sm:$0xff] %vm1750, %v1655
      %1752 = vst.msk [vmem:[#allocation2 + $0x8] sm:$0xff] %vm1750, %v1657
      %1753 = vst.msk [vmem:[#allocation2 + $0x10] sm:$0xff] %vm1750, %v1659
      %1754 = vst.msk [vmem:[#allocation2 + $0x18] sm:$0xff] %vm1750, %v1661
      %1755 = vst.msk [vmem:[#allocation2 + $0x20] sm:$0xff] %vm1750, %v1663
      %1756 = vst.msk [vmem:[#allocation2 + $0x28] sm:$0xff] %vm1750, %v1665
      %1757 = vst.msk [vmem:[#allocation2 + $0x30] sm:$0xff] %vm1750, %v1667
      %1758 = vst.msk [vmem:[#allocation2 + $0x38] sm:$0xff] %vm1750, %v1669
      %1759 = vst.msk [vmem:[#allocation2 + $0x40] sm:$0xff] %vm1750, %v1671
      %1760 = vst.msk [vmem:[#allocation2 + $0x48] sm:$0xff] %vm1750, %v1673
      %1761 = vst.msk [vmem:[#allocation2 + $0x50] sm:$0xff] %vm1750, %v1675
      %1762 = vst.msk [vmem:[#allocation2 + $0x58] sm:$0xff] %vm1750, %v1677
      %1763 = vst.msk [vmem:[#allocation2 + $0x60] sm:$0xff] %vm1750, %v1679
      %1764 = vst.msk [vmem:[#allocation2 + $0x68] sm:$0xff] %vm1750, %v1681
      %1765 = vst.msk [vmem:[#allocation2 + $0x70] sm:$0xff] %vm1750, %v1683
      %1766 = vst.msk [vmem:[#allocation2 + $0x78] sm:$0xff] %vm1750, %v1685
      %1767 = vst.msk [vmem:[#allocation2 + $0x80] sm:$0xff] %vm1750, %v1687
      %1768 = vst.msk [vmem:[#allocation2 + $0x88] sm:$0xff] %vm1750, %v1689
      %1769 = vst.msk [vmem:[#allocation2 + $0x90] sm:$0xff] %vm1750, %v1691
      %1770 = vst.msk [vmem:[#allocation2 + $0x98] sm:$0xff] %vm1750, %v1693
      %1771 = vst.msk [vmem:[#allocation2 + $0xa0] sm:$0xff] %vm1750, %v1695
      %1772 = vst.msk [vmem:[#allocation2 + $0xa8] sm:$0xff] %vm1750, %v1697
      %1773 = vst.msk [vmem:[#allocation2 + $0xb0] sm:$0xff] %vm1750, %v1699
      %1774 = vst.msk [vmem:[#allocation2 + $0xb8] sm:$0xff] %vm1750, %v1701
      %1775 = vst.msk [vmem:[#allocation2 + $0xc0] sm:$0xff] %vm1750, %v1703
      %1776 = vst.msk [vmem:[#allocation2 + $0xc8] sm:$0xff] %vm1750, %v1705
      %1777 = vst.msk [vmem:[#allocation2 + $0xd0] sm:$0xff] %vm1750, %v1707
      %1778 = vst.msk [vmem:[#allocation2 + $0xd8] sm:$0xff] %vm1750, %v1709
      %1779 = vst.msk [vmem:[#allocation2 + $0xe0] sm:$0xff] %vm1750, %v1711
      %1780 = vst.msk [vmem:[#allocation2 + $0xe8] sm:$0xff] %vm1750, %v1713
      %1781 = vst.msk [vmem:[#allocation2 + $0xf0] sm:$0xff] %vm1750, %v1715
      %1782 = vst.msk [vmem:[#allocation2 + $0xf8] sm:$0xff] %vm1750, %v1717
      %v1783 = vld [vmem:[#allocation2] sm:$0xff]
      %v1784 = vld [vmem:[#allocation2 + $0x8] sm:$0xff]
      %v1785 = vld [vmem:[#allocation2 + $0x10] sm:$0xff]
      %v1786 = vld [vmem:[#allocation2 + $0x18] sm:$0xff]
      %v1787 = vld [vmem:[#allocation2 + $0x20] sm:$0xff]
      %v1788 = vld [vmem:[#allocation2 + $0x28] sm:$0xff]
      %v1789 = vld [vmem:[#allocation2 + $0x30] sm:$0xff]
      %v1790 = vld [vmem:[#allocation2 + $0x38] sm:$0xff]
      %v1791 = vld [vmem:[#allocation2 + $0x40] sm:$0xff]
      %v1792 = vld [vmem:[#allocation2 + $0x48] sm:$0xff]
      %v1793 = vld [vmem:[#allocation2 + $0x50] sm:$0xff]
      %v1794 = vld [vmem:[#allocation2 + $0x58] sm:$0xff]
      %v1795 = vld [vmem:[#allocation2 + $0x60] sm:$0xff]
      %v1796 = vld [vmem:[#allocation2 + $0x68] sm:$0xff]
      %v1797 = vld [vmem:[#allocation2 + $0x70] sm:$0xff]
      %v1798 = vld [vmem:[#allocation2 + $0x78] sm:$0xff]
      %v1799 = vld [vmem:[#allocation2 + $0x80] sm:$0xff]
      %v1800 = vld [vmem:[#allocation2 + $0x88] sm:$0xff]
      %v1801 = vld [vmem:[#allocation2 + $0x90] sm:$0xff]
      %v1802 = vld [vmem:[#allocation2 + $0x98] sm:$0xff]
      %v1803 = vld [vmem:[#allocation2 + $0xa0] sm:$0xff]
      %v1804 = vld [vmem:[#allocation2 + $0xa8] sm:$0xff]
      %v1805 = vld [vmem:[#allocation2 + $0xb0] sm:$0xff]
      %v1806 = vld [vmem:[#allocation2 + $0xb8] sm:$0xff]
      %v1807 = vld [vmem:[#allocation2 + $0xc0] sm:$0xff]
      %v1808 = vld [vmem:[#allocation2 + $0xc8] sm:$0xff]
      %v1809 = vld [vmem:[#allocation2 + $0xd0] sm:$0xff]
      %v1810 = vld [vmem:[#allocation2 + $0xd8] sm:$0xff]
      %v1811 = vld [vmem:[#allocation2 + $0xe0] sm:$0xff]
      %v1812 = vld [vmem:[#allocation2 + $0xe8] sm:$0xff]
      %v1813 = vld [vmem:[#allocation2 + $0xf0] sm:$0xff]
      %v1814 = vld [vmem:[#allocation2 + $0xf8] sm:$0xff]
      %v1815 = vpack.c.bf16 %v1784, %v1783
      %v1816 = vpack.c.bf16 %v1786, %v1785
      %v1817 = vpack.c.bf16 %v1788, %v1787
      %v1818 = vpack.c.bf16 %v1790, %v1789
      %v1819 = vpack.c.bf16 %v1792, %v1791
      %v1820 = vpack.c.bf16 %v1794, %v1793
      %v1821 = vpack.c.bf16 %v1796, %v1795
      %v1822 = vpack.c.bf16 %v1798, %v1797
      %v1823 = vpack.c.bf16 %v1800, %v1799
      %v1824 = vpack.c.bf16 %v1802, %v1801
      %v1825 = vpack.c.bf16 %v1804, %v1803
      %v1826 = vpack.c.bf16 %v1806, %v1805
      %v1827 = vpack.c.bf16 %v1808, %v1807
      %v1828 = vpack.c.bf16 %v1810, %v1809
      %v1829 = vpack.c.bf16 %v1812, %v1811
      %v1830 = vpack.c.bf16 %v1814, %v1813
      %v1831 = vld [vmem:[%s1] sm:$0xf]
      %v1832 = vld [vmem:[%s1 + $0x4] sm:$0xf]
      %v1833 = vld [vmem:[%s2] sm:$0xff]
      %v1834 = vld [vmem:[%s2 + $0x8] sm:$0xff]
      %1836 = vset.pattern.permute.xlu0 0
      %1837 = vperm.xlu0 %1836, %v1833
      %v1838 = vpop.permute.xlu0 %1837
      %1841 = vset.pattern.permute.xlu0 0
      %1842 = vperm.xlu0 %1841, %v1834
      %v1843 = vpop.permute.xlu0 %1842
      %v1847 = vunpack.c.l.b16 %v1831
      %v1848 = vunpack.c.l.b16 %v1832
      %v1849 = vpack.c.b16 %v1848, %v1847
      %vm1850 = vcmask 293888
      %v1852 = vsel %vm1850, %v1849, 0
      %v1855 = vsel %vm1850, %v1815, 0
      %v1858 = vsel %vm1850, %v1816, 0
      %v1861 = vsel %vm1850, %v1817, 0
      %v1864 = vsel %vm1850, %v1818, 0
      %v1867 = vsel %vm1850, %v1819, 0
      %v1870 = vsel %vm1850, %v1820, 0
      %v1873 = vsel %vm1850, %v1821, 0
      %v1876 = vsel %vm1850, %v1822, 0
      %v1879 = vsel %vm1850, %v1823, 0
      %v1882 = vsel %vm1850, %v1824, 0
      %v1885 = vsel %vm1850, %v1825, 0
      %v1888 = vsel %vm1850, %v1826, 0
      %v1891 = vsel %vm1850, %v1827, 0
      %v1894 = vsel %vm1850, %v1828, 0
      %v1897 = vsel %vm1850, %v1829, 0
      %v1900 = vsel %vm1850, %v1830, 0
      %1902 = vmatprep.subr.bf16.mxu0 0
      %1903 = vmatpush1.bf16.xpose.msra.mxu0 %v1876
      %1904 = vmatprep.subr.bf16.mxu0 0
      %1905 = vmatpush1.bf16.xpose.msra.mxu0 %v1873
      %1906 = vmatprep.subr.bf16.mxu0 0
      %1907 = vmatpush1.bf16.xpose.msra.mxu0 %v1870
      %1908 = vmatprep.subr.bf16.mxu0 0
      %1909 = vmatpush1.bf16.xpose.msra.mxu0 %v1867
      %1910 = vmatprep.subr.bf16.mxu0 0
      %1911 = vmatpush1.bf16.xpose.msra.mxu0 %v1864
      %1912 = vmatprep.subr.bf16.mxu0 0
      %1913 = vmatpush1.bf16.xpose.msra.mxu0 %v1861
      %1914 = vmatprep.subr.bf16.mxu0 0
      %1915 = vmatpush1.bf16.xpose.msra.mxu0 %v1858
      %1916 = vmatprep.subr.bf16.mxu0 0
      %1917 = vmatpush1.bf16.xpose.msra.mxu0 %v1855
      %1918 = vmatprep.subr.bf16.mxu0 0
      %1919 = vmatpush2.bf16.xpose.msra.mxu0 %v1900
      %1920 = vmatprep.subr.bf16.mxu0 0
      %1921 = vmatpush2.bf16.xpose.msra.mxu0 %v1897
      %1922 = vmatprep.subr.bf16.mxu0 0
      %1923 = vmatpush2.bf16.xpose.msra.mxu0 %v1894
      %1924 = vmatprep.subr.bf16.mxu0 0
      %1925 = vmatpush2.bf16.xpose.msra.mxu0 %v1891
      %1926 = vmatprep.subr.bf16.mxu0 0
      %1927 = vmatpush2.bf16.xpose.msra.mxu0 %v1888
      %1928 = vmatprep.subr.bf16.mxu0 0
      %1929 = vmatpush2.bf16.xpose.msra.mxu0 %v1885
      %1930 = vmatprep.subr.bf16.mxu0 0
      %1931 = vmatpush2.bf16.xpose.msra.mxu0 %v1882
      %1932 = vmatprep.subr.bf16.mxu0 0
      %1933 = vmatpush2.bf16.xpose.msra.mxu0 %v1879
      %1934 = vmatprep.mubr.bf16.mxu0 0
      %1935 = vmatmul.mubr.bf16.gmra.mxu0 %v1852
      %v1936 = vpop.f32.mrf.mxu0
      %v1937 = vadd.f32 %v1838, %v1936
      %v1938 = vpop.f32.mrf.mxu0
      %v1939 = vadd.f32 %v1838, %v1938
      %v1940 = vpop.f32.mrf.mxu0
      %v1941 = vadd.f32 %v1843, %v1940
      %v1942 = vpop.f32.mrf.mxu0
      %v1943 = vadd.f32 %v1843, %v1942
      %1944 = vdwg.mxu0
      %v1945 = vxor.u32 %v1941, 2147483648
      %v1946 = vxor.u32 %v1943, 2147483648
      %v1947 = vmul.f32 %v1945, 1.442695
      %v1948 = vpow.pop %v1947
      %v1949 = vmul.f32 %v1946, 1.442695
      %v1950 = vpow.pop %v1949
      %v1951 = vadd.f32 %v1948, 1.0
      %v1952 = vadd.f32 %v1950, 1.0
      %v1953 = vrcp.pop %v1951
      %v1954 = vmul.f32 1.0, %v1953
      %v1955 = vrcp.pop %v1952
      %v1956 = vmul.f32 1.0, %v1955
      %v1957 = vmul.f32 %v1937, %v1954
      %v1958 = vmul.f32 %v1939, %v1956
      %1959 = vst [vmem:[%s170] sm:$0xff] %v1957
      %1960 = vst [vmem:[%s170 + $0x8] sm:$0xff] %v1958
      %p1961 = scmp.lt.s32.totalorder %s14, 1
      %s1962 = scalar_select %p1961, %s14, 1
      %s1963 = smul.addr %s1962, 2
      %s1964 = smul.addr %s1963, 8
      %s1965 = scalar_lea.vmem %s3, %s1964
      // Predicated region
      $region33: #{gated_conv2d.1} parent=31 // pred_check
        %p1966 = pneg %p100
      $region34: #{gated_conv2d.1} parent=31 // pred_check_branch
        %1968 = sbr.rel (%p1966) target = $region36
      $region35: #{gated_conv2d.1} parent=31 // pred_region
        _
      $region36: #{gated_conv2d.1} parent=31 // pred_fallthru
        _
    $region32: #{gated_conv2d.1} parent=5 // pred_fallthru
      _
    %p1969 = scmp.le.s32.totalorder 2, %s9
    // Predicated region
    $region37: #{gated_conv2d.1} parent=5 // pred_check
      %p1970 = pneg %p1969
    $region38: #{gated_conv2d.1} parent=5 // pred_check_branch
      %1972 = sbr.rel (%p1970) target = $region40
    $region39: #{gated_conv2d.1} parent=5 // pred_region
      %s1973 = ssub.s32 %s9, 2
      // Predicated region
      $region41: #{gated_conv2d.1} parent=39 // pred_check
        %p1974 = pneg %p106
      $region42: #{gated_conv2d.1} parent=39 // pred_check_branch
        %1976 = sbr.rel (%p1974) target = $region44
      $region43: #{gated_conv2d.1} parent=39 // pred_region
        %p1977 = scmp.lt.s32.totalorder %s15, 1
        %s1978 = scalar_select %p1977, %s15, 1
        %s1979 = smul.addr %s1978, 2
        %s1980 = smul.addr %s1979, 8
        %s1981 = scalar_lea.vmem %s3, %s1980
      $region44: #{gated_conv2d.1} parent=39 // pred_fallthru
        _
    $region40: #{gated_conv2d.1} parent=5 // pred_fallthru
      _
  $region6: #{gated_conv2d.1} parent=0 // loop_footer
    %s13 = sadd.s32 1, %s9
  $region7: #{gated_conv2d.1} parent=0 // loop_footer_branch
    %8 = sbr.rel target = $region3
  $region8: #{gated_conv2d.1} parent=0 // loop_exit
    _

</llo_original>
